<compile_context>
chip_gen: v7x
topology: tpu7x:2x2x1
jax: 0.10.0
libtpu: 0.0.40
codegen_flags: <defaults>
</compile_context>

<pallas_src>
import jax
import jax.numpy as jnp
from jax.experimental import pallas as pl
from jax.experimental.pallas import tpu as pltpu

HIDDEN_2 = 512   # projav1 in/out, projav2 in
HIDDEN_1 = 256   # projav2 out, out_layer in
A_DIM = 1024     # out_layer out


def _mlp_kernel(x_ref, w1_ref, b1_ref, w2_ref, b2_ref, w3_ref, b3_ref, o_ref):
    # x_ref: (TM, 512) bf16 tile of the (padded) input rows.
    x = x_ref[...]

    # Linear 1 (512 -> 512) + ReLU  (dropout == identity in eval mode).
    h1 = jnp.dot(x, w1_ref[...], preferred_element_type=jnp.float32) + b1_ref[...]
    h1 = jnp.maximum(h1, 0.0)

    # Linear 2 (512 -> 256).
    h2 = jnp.dot(h1.astype(jnp.bfloat16), w2_ref[...],
                 preferred_element_type=jnp.float32) + b2_ref[...]

    # Linear 3 (256 -> 1024).
    out = jnp.dot(h2.astype(jnp.bfloat16), w3_ref[...],
                  preferred_element_type=jnp.float32) + b3_ref[...]

    o_ref[...] = out.astype(o_ref.dtype)


def _round_up(x, m):
    return ((x + m - 1) // m) * m


def mlp_reconst_a(feats, params, *, tm=256):
    """feats: (..., 512) float32. Returns (..., 1024) float32."""
    w1, b1, w2, b2, w3, b3 = params
    orig_shape = feats.shape
    x = feats.reshape(-1, HIDDEN_2)
    n = x.shape[0]

    # Cap the row tile for small inputs: keep >= 2 grid steps when possible
    # (v7x megacore sharding on the 'parallel' axis) and never pad more than
    # one tile.  tm always a multiple of 8 (sublane constraint).
    tm = min(tm, max(8, _round_up(pl.cdiv(n, 2), 8)))
    n_pad = _round_up(n, tm)
    if n_pad != n:
        x = jnp.pad(x, ((0, n_pad - n), (0, 0)))

    # bf16 weights + activations for MXU-native throughput; f32 accumulation
    # inside the kernel; biases kept f32 and added after accumulation.
    x = x.astype(jnp.bfloat16)
    w1 = w1.astype(jnp.bfloat16)
    w2 = w2.astype(jnp.bfloat16)
    w3 = w3.astype(jnp.bfloat16)
    b1 = b1.reshape(1, HIDDEN_2).astype(jnp.float32)
    b2 = b2.reshape(1, HIDDEN_1).astype(jnp.float32)
    b3 = b3.reshape(1, A_DIM).astype(jnp.float32)

    out = pl.pallas_call(
        _mlp_kernel,
        out_shape=jax.ShapeDtypeStruct((n_pad, A_DIM), jnp.float32),
        grid_spec=pltpu.PrefetchScalarGridSpec(
            num_scalar_prefetch=0,
            grid=(n_pad // tm,),
            in_specs=[
                pl.BlockSpec((tm, HIDDEN_2), lambda i: (i, 0)),        # x tile
                pl.BlockSpec((HIDDEN_2, HIDDEN_2), lambda i: (0, 0)),  # W1 (resident)
                pl.BlockSpec((1, HIDDEN_2), lambda i: (0, 0)),         # b1
                pl.BlockSpec((HIDDEN_2, HIDDEN_1), lambda i: (0, 0)),  # W2 (resident)
                pl.BlockSpec((1, HIDDEN_1), lambda i: (0, 0)),         # b2
                pl.BlockSpec((HIDDEN_1, A_DIM), lambda i: (0, 0)),     # W3 (resident)
                pl.BlockSpec((1, A_DIM), lambda i: (0, 0)),            # b3
            ],
            out_specs=pl.BlockSpec((tm, A_DIM), lambda i: (i, 0)),
        ),
        compiler_params=pltpu.CompilerParams(
            dimension_semantics=("parallel",),
            vmem_limit_bytes=64 << 20,
        ),
    )(x, w1, b1, w2, b2, w3, b3)

    out = out[:n]
    return out.reshape(*orig_shape[:-1], A_DIM)


def init_params(key):
    """Deterministic init matching nn.Linear shapes (weights pre-transposed to (in, out))."""
    k1, k2, k3, k4, k5, k6 = jax.random.split(key, 6)

    def uniform(k, shape, fan_in):
        bound = 1.0 / jnp.sqrt(fan_in)
        return jax.random.uniform(k, shape, jnp.float32, -bound, bound)

    w1 = uniform(k1, (HIDDEN_2, HIDDEN_2), HIDDEN_2)  # projav1: (in=512, out=512)
    b1 = uniform(k2, (HIDDEN_2,), HIDDEN_2)
    w2 = uniform(k3, (HIDDEN_2, HIDDEN_1), HIDDEN_2)  # projav2: (in=512, out=256)
    b2 = uniform(k4, (HIDDEN_1,), HIDDEN_2)
    w3 = uniform(k5, (HIDDEN_1, A_DIM), HIDDEN_1)     # out_layer: (in=256, out=1024)
    b3 = uniform(k6, (A_DIM,), HIDDEN_1)
    return (w1, b1, w2, b2, w3, b3)


def reference_f32(feats, params):
    w1, b1, w2, b2, w3, b3 = params
    h1 = jnp.maximum(feats @ w1 + b1, 0.0)
    h2 = h1 @ w2 + b2
    return h2 @ w3 + b3


def reference_bf16(feats, params):
    """Matches the kernel's precision choices (bf16 matmuls, f32 accum, f32 bias)."""
    w1, b1, w2, b2, w3, b3 = params
    x = feats.astype(jnp.bfloat16)
    h1 = jnp.dot(x, w1.astype(jnp.bfloat16), preferred_element_type=jnp.float32) + b1
    h1 = jnp.maximum(h1, 0.0)
    h2 = jnp.dot(h1.astype(jnp.bfloat16), w2.astype(jnp.bfloat16),
                 preferred_element_type=jnp.float32) + b2
    return jnp.dot(h2.astype(jnp.bfloat16), w3.astype(jnp.bfloat16),
                   preferred_element_type=jnp.float32) + b3


if __name__ == "__main__":
    key = jax.random.PRNGKey(0)
    kp, kx1, kx2 = jax.random.split(key, 3)

    params = init_params(kp)

    # Case 1: batch=2, seq=8, feature=512 (row count divides the capped tile).
    feats = jax.random.normal(kx1, (2, 8, HIDDEN_2), dtype=jnp.float32)
    out = jax.block_until_ready(mlp_reconst_a(feats, params))
    assert out.shape == (2, 8, A_DIM)

    flat = feats.reshape(-1, HIDDEN_2)
    ref_bf16 = reference_bf16(flat, params).reshape(2, 8, A_DIM)
    ref_f32 = reference_f32(flat, params).reshape(2, 8, A_DIM)
    assert jnp.allclose(out, ref_bf16, atol=2e-2, rtol=2e-2)
    # Loose check vs full-f32 PyTorch semantics (expected bf16 precision loss).
    assert jnp.allclose(out, ref_f32, atol=5e-2, rtol=5e-2)

    # Case 2: ragged row count (3 rows) exercises the padding path.
    feats2 = jax.random.normal(kx2, (3, HIDDEN_2), dtype=jnp.float32)
    out2 = jax.block_until_ready(mlp_reconst_a(feats2, params))
    assert out2.shape == (3, A_DIM)
    assert jnp.allclose(out2, reference_bf16(feats2, params), atol=2e-2, rtol=2e-2)

    print("KERNEL_OK")
</pallas_src>

<mosaic_0001>
module attributes {stable_mosaic.version = 11 : i64} {
  func.func @_mlp_kernel(%arg0: i32, %arg1: memref<8x512xbf16, #tpu.memory_space<vmem>>, %arg2: memref<512x512xbf16, #tpu.memory_space<vmem>>, %arg3: memref<1x512xf32, #tpu.memory_space<vmem>>, %arg4: memref<512x256xbf16, #tpu.memory_space<vmem>>, %arg5: memref<1x256xf32, #tpu.memory_space<vmem>>, %arg6: memref<256x1024xbf16, #tpu.memory_space<vmem>>, %arg7: memref<1x1024xf32, #tpu.memory_space<vmem>>, %arg8: memref<8x1024xf32, #tpu.memory_space<vmem>>) attributes {dimension_semantics = [#tpu.dimension_semantics<parallel>], iteration_bounds = array<i64: 2>, scalar_prefetch = 0 : i64, scratch_operands = 0 : i64, tpu.core_type = #tpu.core_type<tc>, window_params = [{transform_indices = @transform_0, window_bounds = array<i64: 8, 512>}, {pipeline_mode = #tpu.pipeline_mode<synchronous>, transform_indices = @transform_1, window_bounds = array<i64: 512, 512>}, {pipeline_mode = #tpu.pipeline_mode<synchronous>, transform_indices = @transform_2, window_bounds = array<i64: 1, 512>}, {pipeline_mode = #tpu.pipeline_mode<synchronous>, transform_indices = @transform_3, window_bounds = array<i64: 512, 256>}, {pipeline_mode = #tpu.pipeline_mode<synchronous>, transform_indices = @transform_4, window_bounds = array<i64: 1, 256>}, {pipeline_mode = #tpu.pipeline_mode<synchronous>, transform_indices = @transform_5, window_bounds = array<i64: 256, 1024>}, {pipeline_mode = #tpu.pipeline_mode<synchronous>, transform_indices = @transform_6, window_bounds = array<i64: 1, 1024>}, {transform_indices = @transform_7, window_bounds = array<i64: 8, 1024>}]} {
    %c0 = arith.constant 0 : index
    %c0_0 = arith.constant 0 : index
    %0 = vector.load %arg1[%c0, %c0_0] : memref<8x512xbf16, #tpu.memory_space<vmem>>, vector<8x512xbf16>
    %c0_1 = arith.constant 0 : index
    %c0_2 = arith.constant 0 : index
    %1 = vector.load %arg2[%c0_1, %c0_2] : memref<512x512xbf16, #tpu.memory_space<vmem>>, vector<512x512xbf16>
    %cst = arith.constant dense<0.000000e+00> : vector<8x512xf32>
    %2 = tpu.matmul %0, %1, %cst {dimension_numbers = #tpu.dot_dimension_numbers<[1], [0], [0], [1], [0, 0, 1, 1], [], []>} : vector<8x512xbf16>, vector<512x512xbf16>, vector<8x512xf32> -> vector<8x512xf32>
    %c0_3 = arith.constant 0 : index
    %c0_4 = arith.constant 0 : index
    %3 = vector.load %arg3[%c0_3, %c0_4] : memref<1x512xf32, #tpu.memory_space<vmem>>, vector<1x512xf32>
    %4 = vector.broadcast %3 : vector<1x512xf32> to vector<8x512xf32>
    %5 = arith.addf %2, %4 : vector<8x512xf32>
    %cst_5 = arith.constant 0.000000e+00 : f32
    %6 = vector.broadcast %cst_5 : f32 to vector<8x512xf32>
    %7 = arith.maximumf %5, %6 : vector<8x512xf32>
    %8 = arith.truncf %7 : vector<8x512xf32> to vector<8x512xbf16>
    %c0_6 = arith.constant 0 : index
    %c0_7 = arith.constant 0 : index
    %9 = vector.load %arg4[%c0_6, %c0_7] : memref<512x256xbf16, #tpu.memory_space<vmem>>, vector<512x256xbf16>
    %cst_8 = arith.constant dense<0.000000e+00> : vector<8x256xf32>
    %10 = tpu.matmul %8, %9, %cst_8 {dimension_numbers = #tpu.dot_dimension_numbers<[1], [0], [0], [1], [0, 0, 1, 1], [], []>} : vector<8x512xbf16>, vector<512x256xbf16>, vector<8x256xf32> -> vector<8x256xf32>
    %c0_9 = arith.constant 0 : index
    %c0_10 = arith.constant 0 : index
    %11 = vector.load %arg5[%c0_9, %c0_10] : memref<1x256xf32, #tpu.memory_space<vmem>>, vector<1x256xf32>
    %12 = vector.broadcast %11 : vector<1x256xf32> to vector<8x256xf32>
    %13 = arith.addf %10, %12 : vector<8x256xf32>
    %14 = arith.truncf %13 : vector<8x256xf32> to vector<8x256xbf16>
    %c0_11 = arith.constant 0 : index
    %c0_12 = arith.constant 0 : index
    %15 = vector.load %arg6[%c0_11, %c0_12] : memref<256x1024xbf16, #tpu.memory_space<vmem>>, vector<256x1024xbf16>
    %cst_13 = arith.constant dense<0.000000e+00> : vector<8x1024xf32>
    %16 = tpu.matmul %14, %15, %cst_13 {dimension_numbers = #tpu.dot_dimension_numbers<[1], [0], [0], [1], [0, 0, 1, 1], [], []>} : vector<8x256xbf16>, vector<256x1024xbf16>, vector<8x1024xf32> -> vector<8x1024xf32>
    %c0_14 = arith.constant 0 : index
    %c0_15 = arith.constant 0 : index
    %17 = vector.load %arg7[%c0_14, %c0_15] : memref<1x1024xf32, #tpu.memory_space<vmem>>, vector<1x1024xf32>
    %18 = vector.broadcast %17 : vector<1x1024xf32> to vector<8x1024xf32>
    %19 = arith.addf %16, %18 : vector<8x1024xf32>
    %c0_16 = arith.constant 0 : index
    %c0_17 = arith.constant 0 : index
    %20 = vector.load %arg8[%c0_16, %c0_17] : memref<8x1024xf32, #tpu.memory_space<vmem>>, vector<8x1024xf32>
    tpu.vector_store %arg8[%c0_16, %c0_17], %19 {strides = array<i32>} : memref<8x1024xf32, #tpu.memory_space<vmem>>, vector<8x1024xf32>,
    return
  }
  func.func @transform_0(%arg0: i32) -> (i32, i32) {
    %c0_i32 = arith.constant 0 : i32
    %c0_i32_0 = arith.constant 0 : i32
    return %arg0, %c0_i32 : i32, i32
  }
  func.func @transform_1(%arg0: i32) -> (i32, i32) {
    %c0_i32 = arith.constant 0 : i32
    %c0_i32_0 = arith.constant 0 : i32
    %c0_i32_1 = arith.constant 0 : i32
    return %c0_i32, %c0_i32_0 : i32, i32
  }
  func.func @transform_2(%arg0: i32) -> (i32, i32) {
    %c0_i32 = arith.constant 0 : i32
    %c0_i32_0 = arith.constant 0 : i32
    %c0_i32_1 = arith.constant 0 : i32
    return %c0_i32, %c0_i32_0 : i32, i32
  }
  func.func @transform_3(%arg0: i32) -> (i32, i32) {
    %c0_i32 = arith.constant 0 : i32
    %c0_i32_0 = arith.constant 0 : i32
    %c0_i32_1 = arith.constant 0 : i32
    return %c0_i32, %c0_i32_0 : i32, i32
  }
  func.func @transform_4(%arg0: i32) -> (i32, i32) {
    %c0_i32 = arith.constant 0 : i32
    %c0_i32_0 = arith.constant 0 : i32
    %c0_i32_1 = arith.constant 0 : i32
    return %c0_i32, %c0_i32_0 : i32, i32
  }
  func.func @transform_5(%arg0: i32) -> (i32, i32) {
    %c0_i32 = arith.constant 0 : i32
    %c0_i32_0 = arith.constant 0 : i32
    %c0_i32_1 = arith.constant 0 : i32
    return %c0_i32, %c0_i32_0 : i32, i32
  }
  func.func @transform_6(%arg0: i32) -> (i32, i32) {
    %c0_i32 = arith.constant 0 : i32
    %c0_i32_0 = arith.constant 0 : i32
    %c0_i32_1 = arith.constant 0 : i32
    return %c0_i32, %c0_i32_0 : i32, i32
  }
  func.func @transform_7(%arg0: i32) -> (i32, i32) {
    %c0_i32 = arith.constant 0 : i32
    %c0_i32_0 = arith.constant 0 : i32
    return %arg0, %c0_i32 : i32, i32
  }
}

</mosaic_0001>

<llo_original>
// kernel: tpu_custom_call.1
$region0: #{tpu_custom_call.1}
  #allocation0 [shape = 'u32[]', space=smem, size = 0x4, offset = 0x4, fixed_abs, tag = 'smem constant byte address 0x4 - core index']
  #allocation1 [shape = 'u32[144,128]{1,0:T(1,128)}', space=vmem, size = 0x12000, scoped, tag = 'internal scratch']
  %s0 = inlined_call_operand.hbm [shape: bf16[16,512], index: 0, kind: input, shape index: {}]
  %s1 = inlined_call_operand.hbm [shape: bf16[512,512], index: 1, kind: input, shape index: {}]
  %s2 = inlined_call_operand.hbm [shape: f32[1,512], index: 2, kind: input, shape index: {}]
  %s3 = inlined_call_operand.hbm [shape: bf16[512,256], index: 3, kind: input, shape index: {}]
  %s4 = inlined_call_operand.hbm [shape: f32[1,256], index: 4, kind: input, shape index: {}]
  %s5 = inlined_call_operand.hbm [shape: bf16[256,1024], index: 5, kind: input, shape index: {}]
  %s6 = inlined_call_operand.hbm [shape: f32[1,1024], index: 6, kind: input, shape index: {}]
  %s7 = inlined_call_operand.hbm [shape: f32[16,1024], index: 7, kind: output, shape index: {}]
  %s8 = sld [smem:[#allocation0]]
  $region89: #{tpu_custom_call.1} parent=0
    _
  %s10 = ssub.s32 1, %s8
  %s11 = scalar_select 0, %s10, %s8
  $region1: #{tpu_custom_call.1} parent=0
    #allocation2 [shape = 'u8[16384]{0}', space=vmem, size = 0x4000, scoped, tag = 'input window, operand 0']
    #allocation3 [shape = 's32[2]{0}', space=sflag, size = 0x8, scoped, tag = 'scoped memory for tpu_custom_call.1']
    #allocation4 [shape = 's32[2]{0}', space=sflag, size = 0x8, scoped, tag = 'scoped memory for tpu_custom_call.1']
    #allocation5 [shape = 'u8[524288]{0}', space=vmem, size = 0x80000, scoped, tag = 'input window, operand 1, single buffered']
    #allocation6 [shape = 's32[1]{0}', space=sflag, size = 0x4, scoped, tag = 'scoped memory for tpu_custom_call.1']
    #allocation7 [shape = 'u8[2048]{0}', space=vmem, size = 0x800, scoped, tag = 'input window, operand 2, single buffered']
    #allocation8 [shape = 'u8[262144]{0}', space=vmem, size = 0x40000, scoped, tag = 'input window, operand 3, single buffered']
    #allocation9 [shape = 's32[1]{0}', space=sflag, size = 0x4, scoped, tag = 'scoped memory for tpu_custom_call.1']
    #allocation10 [shape = 'u8[1024]{0}', space=vmem, size = 0x400, scoped, tag = 'input window, operand 4, single buffered']
    #allocation11 [shape = 'u8[524288]{0}', space=vmem, size = 0x80000, scoped, tag = 'input window, operand 5, single buffered']
    #allocation12 [shape = 's32[1]{0}', space=sflag, size = 0x4, scoped, tag = 'scoped memory for tpu_custom_call.1']
    #allocation13 [shape = 'u8[4096]{0}', space=vmem, size = 0x1000, scoped, tag = 'input window, operand 6, single buffered']
    #allocation14 [shape = 'u8[65536]{0}', space=vmem, size = 0x10000, scoped, tag = 'output window, operand 0']
    %12 = vsyncpa [#allocation3], 0
    %s13 = scalar_lea.sflag [#allocation3], 1
    %14 = vsyncpa %s13, 0
    %15 = vsyncpa [#allocation6], 0
    %16 = vsyncpa [#allocation9], 0
    %17 = vsyncpa [#allocation12], 0
    %18 = vsyncpa [#allocation4], 0
    %s19 = scalar_lea.sflag [#allocation4], 1
    %20 = vsyncpa %s19, 0
    loop: start=0, step=1, limit=4
    $region2: #{tpu_custom_call.1} parent=1 // loop_pre_header
      _
    $region3: #{tpu_custom_call.1} parent=1 // loop_header
      %s22 = sphi 0, %s26
      %p23 = scmp.ge.s32.totalorder %s22, 4
      %s32 = sphi 0, %s34
      %s35 = sphi 0, %s32
      %s36 = sphi 0, %s35
      %s52 = sphi 0, %s36
      %s56 = sphi 0, %s56
      %s58 = sphi 0, %s56
      %s59 = sphi 0, %s58
      %s73 = sphi 0, %s59
      %s77 = sphi 0, %s77
      %s79 = sphi 0, %s77
      %s80 = sphi 0, %s79
      %s94 = sphi 0, %s80
      %s98 = sphi 0, %s98
      %s100 = sphi 0, %s98
      %s101 = sphi 0, %s100
      %s115 = sphi 0, %s101
      %s119 = sphi 0, %s119
      %s121 = sphi 0, %s119
      %s122 = sphi 0, %s121
      %s136 = sphi 0, %s122
      %s140 = sphi 0, %s140
      %s142 = sphi 0, %s140
      %s143 = sphi 0, %s142
      %s157 = sphi 0, %s143
      %s161 = sphi 0, %s161
      %s163 = sphi 0, %s161
      %s164 = sphi 0, %s163
      %s178 = sphi 0, %s164
      %s184 = sphi 0, %s186
      %s187 = sphi 0, %s184
      %s188 = sphi 0, %s187
      %s204 = sphi 0, %s188
    $region4: #{tpu_custom_call.1} parent=1 // loop_header_branch
      %25 = sbr.rel (%p23) target = $region8
    $region5: #{tpu_custom_call.1} parent=1 // loop_body
      %s27 = ssub.s32 %s22, 1
      %s28 = ssub.s32 %s22, 2
      %s29 = sadd.s32 %s22, 1
      %s30 = ssub.s32 %s22, %s29
      %p31 = scmp.eq.s32.totalorder %s30, 0
      %s33 = sadd.s32 %s32, 1
      %s34 = scalar_select %p31, %s32, %s33
      %p37 = pneg %p31
      %p38 = scmp.eq.s32.totalorder %s22, 1
      %p39 = por %p37, %p38
      %p40 = scmp.ne.s32.totalorder %s32, %s35
      %p41 = scmp.eq.s32.totalorder %s22, 0
      %p42 = por %p40, %p41
      %p43 = scmp.ne.s32.totalorder %s32, %s35
      %p44 = scmp.eq.s32.totalorder %s27, 1
      %p45 = por %p43, %p44
      %p46 = scmp.ne.s32.totalorder %s35, %s36
      %p47 = scmp.eq.s32.totalorder %s27, 0
      %p48 = por %p46, %p47
      %p49 = scmp.ne.s32.totalorder %s35, %s36
      %p50 = scmp.eq.s32.totalorder %s28, 1
      %p51 = por %p49, %p50
      %p53 = scmp.ne.s32.totalorder %s36, %s52
      %p54 = scmp.eq.s32.totalorder %s28, 0
      %p55 = por %p53, %p54
      %s57 = sadd.s32 %s56, 1
      %p60 = scmp.eq.s32.totalorder %s22, 1
      %p61 = scmp.ne.s32.totalorder %s56, %s58
      %p62 = scmp.eq.s32.totalorder %s22, 0
      %p63 = por %p61, %p62
      %p64 = scmp.ne.s32.totalorder %s56, %s58
      %p65 = scmp.eq.s32.totalorder %s27, 1
      %p66 = por %p64, %p65
      %p67 = scmp.ne.s32.totalorder %s58, %s59
      %p68 = scmp.eq.s32.totalorder %s27, 0
      %p69 = por %p67, %p68
      %p70 = scmp.ne.s32.totalorder %s58, %s59
      %p71 = scmp.eq.s32.totalorder %s28, 1
      %p72 = por %p70, %p71
      %p74 = scmp.ne.s32.totalorder %s59, %s73
      %p75 = scmp.eq.s32.totalorder %s28, 0
      %p76 = por %p74, %p75
      %s78 = sadd.s32 %s77, 1
      %p81 = scmp.eq.s32.totalorder %s22, 1
      %p82 = scmp.ne.s32.totalorder %s77, %s79
      %p83 = scmp.eq.s32.totalorder %s22, 0
      %p84 = por %p82, %p83
      %p85 = scmp.ne.s32.totalorder %s77, %s79
      %p86 = scmp.eq.s32.totalorder %s27, 1
      %p87 = por %p85, %p86
      %p88 = scmp.ne.s32.totalorder %s79, %s80
      %p89 = scmp.eq.s32.totalorder %s27, 0
      %p90 = por %p88, %p89
      %p91 = scmp.ne.s32.totalorder %s79, %s80
      %p92 = scmp.eq.s32.totalorder %s28, 1
      %p93 = por %p91, %p92
      %p95 = scmp.ne.s32.totalorder %s80, %s94
      %p96 = scmp.eq.s32.totalorder %s28, 0
      %p97 = por %p95, %p96
      %s99 = sadd.s32 %s98, 1
      %p102 = scmp.eq.s32.totalorder %s22, 1
      %p103 = scmp.ne.s32.totalorder %s98, %s100
      %p104 = scmp.eq.s32.totalorder %s22, 0
      %p105 = por %p103, %p104
      %p106 = scmp.ne.s32.totalorder %s98, %s100
      %p107 = scmp.eq.s32.totalorder %s27, 1
      %p108 = por %p106, %p107
      %p109 = scmp.ne.s32.totalorder %s100, %s101
      %p110 = scmp.eq.s32.totalorder %s27, 0
      %p111 = por %p109, %p110
      %p112 = scmp.ne.s32.totalorder %s100, %s101
      %p113 = scmp.eq.s32.totalorder %s28, 1
      %p114 = por %p112, %p113
      %p116 = scmp.ne.s32.totalorder %s101, %s115
      %p117 = scmp.eq.s32.totalorder %s28, 0
      %p118 = por %p116, %p117
      %s120 = sadd.s32 %s119, 1
      %p123 = scmp.eq.s32.totalorder %s22, 1
      %p124 = scmp.ne.s32.totalorder %s119, %s121
      %p125 = scmp.eq.s32.totalorder %s22, 0
      %p126 = por %p124, %p125
      %p127 = scmp.ne.s32.totalorder %s119, %s121
      %p128 = scmp.eq.s32.totalorder %s27, 1
      %p129 = por %p127, %p128
      %p130 = scmp.ne.s32.totalorder %s121, %s122
      %p131 = scmp.eq.s32.totalorder %s27, 0
      %p132 = por %p130, %p131
      %p133 = scmp.ne.s32.totalorder %s121, %s122
      %p134 = scmp.eq.s32.totalorder %s28, 1
      %p135 = por %p133, %p134
      %p137 = scmp.ne.s32.totalorder %s122, %s136
      %p138 = scmp.eq.s32.totalorder %s28, 0
      %p139 = por %p137, %p138
      %s141 = sadd.s32 %s140, 1
      %p144 = scmp.eq.s32.totalorder %s22, 1
      %p145 = scmp.ne.s32.totalorder %s140, %s142
      %p146 = scmp.eq.s32.totalorder %s22, 0
      %p147 = por %p145, %p146
      %p148 = scmp.ne.s32.totalorder %s140, %s142
      %p149 = scmp.eq.s32.totalorder %s27, 1
      %p150 = por %p148, %p149
      %p151 = scmp.ne.s32.totalorder %s142, %s143
      %p152 = scmp.eq.s32.totalorder %s27, 0
      %p153 = por %p151, %p152
      %p154 = scmp.ne.s32.totalorder %s142, %s143
      %p155 = scmp.eq.s32.totalorder %s28, 1
      %p156 = por %p154, %p155
      %p158 = scmp.ne.s32.totalorder %s143, %s157
      %p159 = scmp.eq.s32.totalorder %s28, 0
      %p160 = por %p158, %p159
      %s162 = sadd.s32 %s161, 1
      %p165 = scmp.eq.s32.totalorder %s22, 1
      %p166 = scmp.ne.s32.totalorder %s161, %s163
      %p167 = scmp.eq.s32.totalorder %s22, 0
      %p168 = por %p166, %p167
      %p169 = scmp.ne.s32.totalorder %s161, %s163
      %p170 = scmp.eq.s32.totalorder %s27, 1
      %p171 = por %p169, %p170
      %p172 = scmp.ne.s32.totalorder %s163, %s164
      %p173 = scmp.eq.s32.totalorder %s27, 0
      %p174 = por %p172, %p173
      %p175 = scmp.ne.s32.totalorder %s163, %s164
      %p176 = scmp.eq.s32.totalorder %s28, 1
      %p177 = por %p175, %p176
      %p179 = scmp.ne.s32.totalorder %s164, %s178
      %p180 = scmp.eq.s32.totalorder %s28, 0
      %p181 = por %p179, %p180
      %s182 = ssub.s32 %s22, %s29
      %p183 = scmp.eq.s32.totalorder %s182, 0
      %s185 = sadd.s32 %s184, 1
      %s186 = scalar_select %p183, %s184, %s185
      %p189 = pneg %p183
      %p190 = scmp.eq.s32.totalorder %s22, 1
      %p191 = por %p189, %p190
      %p192 = scmp.ne.s32.totalorder %s184, %s187
      %p193 = scmp.eq.s32.totalorder %s22, 0
      %p194 = por %p192, %p193
      %p195 = scmp.ne.s32.totalorder %s184, %s187
      %p196 = scmp.eq.s32.totalorder %s27, 1
      %p197 = por %p195, %p196
      %p198 = scmp.ne.s32.totalorder %s187, %s188
      %p199 = scmp.eq.s32.totalorder %s27, 0
      %p200 = por %p198, %p199
      %p201 = scmp.ne.s32.totalorder %s187, %s188
      %p202 = scmp.eq.s32.totalorder %s28, 1
      %p203 = por %p201, %p202
      %p205 = scmp.ne.s32.totalorder %s188, %s204
      %p206 = scmp.eq.s32.totalorder %s28, 0
      %p207 = por %p205, %p206
      %p208 = scmp.le.s32.totalorder 1, %s22
      %p209 = scmp.lt.s32.totalorder %s22, 3
      %p210 = pnand %p208, %p209
      %p211 = pneg %p210
      // Predicated region
      $region9: #{tpu_custom_call.1} parent=5 // pred_check
        _
      $region10: #{tpu_custom_call.1} parent=5 // pred_check_branch
        %213 = sbr.rel (%p210) target = $region12
      $region11: #{tpu_custom_call.1} parent=5 // pred_region
        %s214 = ssub.s32 %s22, 1
        // Predicated region
        $region13: #{tpu_custom_call.1} parent=11 // pred_check
          %p215 = pneg %p69
        $region14: #{tpu_custom_call.1} parent=11 // pred_check_branch
          %217 = sbr.rel (%p215) target = $region16
        $region15: #{tpu_custom_call.1} parent=11 // pred_region
          %s219 = ssub.s32 16384, 16384
          %220 = vsyncadd [#allocation6], %s219
          %s221 = sshll.u32 [#allocation5], 4
          %s222 = int_to_ptr.vmem [resolvable:$true] %s221
          %227 = dma.hbm_to_vmem [thread:$0]  %s1, 16384, %s222, [#allocation6], 256, 256, 16
        $region16: #{tpu_custom_call.1} parent=11 // pred_fallthru
          _
        // Predicated region
        $region17: #{tpu_custom_call.1} parent=11 // pred_check
          %p228 = pneg %p90
        $region18: #{tpu_custom_call.1} parent=11 // pred_check_branch
          %230 = sbr.rel (%p228) target = $region20
        $region19: #{tpu_custom_call.1} parent=11 // pred_region
          %s232 = ssub.s32 64, 64
          %233 = vsyncadd [#allocation6], %s232
          %s235 = sshll.u32 [#allocation7], 4
          %s236 = int_to_ptr.vmem [resolvable:$true] %s235
          %238 = dma.hbm_to_vmem [thread:$0]  %s2, 64, %s236, [#allocation6]
        $region20: #{tpu_custom_call.1} parent=11 // pred_fallthru
          _
        // Predicated region
        $region21: #{tpu_custom_call.1} parent=11 // pred_check
          %p239 = pneg %p111
        $region22: #{tpu_custom_call.1} parent=11 // pred_check_branch
          %241 = sbr.rel (%p239) target = $region24
        $region23: #{tpu_custom_call.1} parent=11 // pred_region
          %s243 = ssub.s32 8192, 8192
          %244 = vsyncadd [#allocation9], %s243
          %s245 = sshll.u32 [#allocation8], 4
          %s246 = int_to_ptr.vmem [resolvable:$true] %s245
          %251 = dma.hbm_to_vmem [thread:$0]  %s3, 8192, %s246, [#allocation9], 128, 128, 8
        $region24: #{tpu_custom_call.1} parent=11 // pred_fallthru
          _
        // Predicated region
        $region25: #{tpu_custom_call.1} parent=11 // pred_check
          %p252 = pneg %p132
        $region26: #{tpu_custom_call.1} parent=11 // pred_check_branch
          %254 = sbr.rel (%p252) target = $region28
        $region27: #{tpu_custom_call.1} parent=11 // pred_region
          %s256 = ssub.s32 32, 32
          %257 = vsyncadd [#allocation9], %s256
          %s259 = sshll.u32 [#allocation10], 4
          %s260 = int_to_ptr.vmem [resolvable:$true] %s259
          %262 = dma.hbm_to_vmem [thread:$0]  %s4, 32, %s260, [#allocation9]
        $region28: #{tpu_custom_call.1} parent=11 // pred_fallthru
          _
        // Predicated region
        $region29: #{tpu_custom_call.1} parent=11 // pred_check
          %p263 = pneg %p153
        $region30: #{tpu_custom_call.1} parent=11 // pred_check_branch
          %265 = sbr.rel (%p263) target = $region32
        $region31: #{tpu_custom_call.1} parent=11 // pred_region
          %s267 = ssub.s32 16384, 16384
          %268 = vsyncadd [#allocation12], %s267
          %s269 = sshll.u32 [#allocation11], 4
          %s270 = int_to_ptr.vmem [resolvable:$true] %s269
          %275 = dma.hbm_to_vmem [thread:$0]  %s5, 16384, %s270, [#allocation12], 512, 512, 32
        $region32: #{tpu_custom_call.1} parent=11 // pred_fallthru
          _
        // Predicated region
        $region33: #{tpu_custom_call.1} parent=11 // pred_check
          %p276 = pneg %p174
        $region34: #{tpu_custom_call.1} parent=11 // pred_check_branch
          %278 = sbr.rel (%p276) target = $region36
        $region35: #{tpu_custom_call.1} parent=11 // pred_region
          %s280 = ssub.s32 128, 128
          %281 = vsyncadd [#allocation12], %s280
          %s283 = sshll.u32 [#allocation13], 4
          %s284 = int_to_ptr.vmem [resolvable:$true] %s283
          %286 = dma.hbm_to_vmem [thread:$0]  %s6, 128, %s284, [#allocation12]
        $region36: #{tpu_custom_call.1} parent=11 // pred_fallthru
          _
      $region12: #{tpu_custom_call.1} parent=5 // pred_fallthru
        _
      %p287 = scmp.lt.s32.totalorder %s22, 2
      // Predicated region
      $region37: #{tpu_custom_call.1} parent=5 // pred_check
        %p288 = pneg %p287
      $region38: #{tpu_custom_call.1} parent=5 // pred_check_branch
        %290 = sbr.rel (%p288) target = $region40
      $region39: #{tpu_custom_call.1} parent=5 // pred_region
        // Predicated region
        $region41: #{tpu_custom_call.1} parent=39 // pred_check
          %p291 = pneg %p42
        $region42: #{tpu_custom_call.1} parent=39 // pred_check_branch
          %293 = sbr.rel (%p291) target = $region44
        $region43: #{tpu_custom_call.1} parent=39 // pred_region
          %s294 = sand.u32 %s32, 1
          %s295 = scalar_lea.sflag [#allocation3], %s294
          %s296 = sand.u32 %s32, 1
          %s297 = smul.addr %s296, 16
          %s298 = scalar_lea.vmem [#allocation2], %s297
          %s300 = ssub.s32 256, 256
          %301 = vsyncadd %s295, %s300
          %s302 = smul.addr %s22, 4
          %s303 = smul.addr %s302, 64
          %s304 = scalar_lea.hbm %s0, %s303
          %s306 = sshll.u32 %s298, 4
          %s307 = int_to_ptr.vmem [resolvable:$true] %s306
          %309 = dma.hbm_to_vmem [thread:$0]  %s304, 256, %s307, %s295
        $region44: #{tpu_custom_call.1} parent=39 // pred_fallthru
          _
      $region40: #{tpu_custom_call.1} parent=5 // pred_fallthru
        _
      %p310 = scmp.le.s32.totalorder 1, %s22
      %p311 = scmp.lt.s32.totalorder %s22, 3
      %p312 = pnand %p310, %p311
      %p313 = pneg %p312
      // Predicated region
      $region45: #{tpu_custom_call.1} parent=5 // pred_check
        _
      $region46: #{tpu_custom_call.1} parent=5 // pred_check_branch
        %315 = sbr.rel (%p312) target = $region48
      $region47: #{tpu_custom_call.1} parent=5 // pred_region
        %s316 = ssub.s32 %s22, 1
        %s317 = sand.u32 %s35, 1
        %s318 = scalar_lea.sflag [#allocation3], %s317
        %s319 = sand.u32 %s35, 1
        %s320 = smul.addr %s319, 16
        %s321 = scalar_lea.vmem [#allocation2], %s320
        // Predicated region
        $region49: #{tpu_custom_call.1} parent=47 // pred_check
          %p322 = pneg %p48
        $region50: #{tpu_custom_call.1} parent=47 // pred_check_branch
          %324 = sbr.rel (%p322) target = $region52
        $region51: #{tpu_custom_call.1} parent=47 // pred_region
          %325 = dma.done %s318, 256
        $region52: #{tpu_custom_call.1} parent=47 // pred_fallthru
          _
        // Predicated region
        $region53: #{tpu_custom_call.1} parent=47 // pred_check
          %p326 = pneg %p69
        $region54: #{tpu_custom_call.1} parent=47 // pred_check_branch
          %328 = sbr.rel (%p326) target = $region56
        $region55: #{tpu_custom_call.1} parent=47 // pred_region
          %329 = dma.done [#allocation6], 16384
        $region56: #{tpu_custom_call.1} parent=47 // pred_fallthru
          _
        // Predicated region
        $region57: #{tpu_custom_call.1} parent=47 // pred_check
          %p330 = pneg %p90
        $region58: #{tpu_custom_call.1} parent=47 // pred_check_branch
          %332 = sbr.rel (%p330) target = $region60
        $region59: #{tpu_custom_call.1} parent=47 // pred_region
          %333 = dma.done [#allocation6], 64
        $region60: #{tpu_custom_call.1} parent=47 // pred_fallthru
          _
        // Predicated region
        $region61: #{tpu_custom_call.1} parent=47 // pred_check
          %p334 = pneg %p111
        $region62: #{tpu_custom_call.1} parent=47 // pred_check_branch
          %336 = sbr.rel (%p334) target = $region64
        $region63: #{tpu_custom_call.1} parent=47 // pred_region
          %337 = dma.done [#allocation9], 8192
        $region64: #{tpu_custom_call.1} parent=47 // pred_fallthru
          _
        // Predicated region
        $region65: #{tpu_custom_call.1} parent=47 // pred_check
          %p338 = pneg %p132
        $region66: #{tpu_custom_call.1} parent=47 // pred_check_branch
          %340 = sbr.rel (%p338) target = $region68
        $region67: #{tpu_custom_call.1} parent=47 // pred_region
          %341 = dma.done [#allocation9], 32
        $region68: #{tpu_custom_call.1} parent=47 // pred_fallthru
          _
        // Predicated region
        $region69: #{tpu_custom_call.1} parent=47 // pred_check
          %p342 = pneg %p153
        $region70: #{tpu_custom_call.1} parent=47 // pred_check_branch
          %344 = sbr.rel (%p342) target = $region72
        $region71: #{tpu_custom_call.1} parent=47 // pred_region
          %345 = dma.done [#allocation12], 16384
        $region72: #{tpu_custom_call.1} parent=47 // pred_fallthru
          _
        // Predicated region
        $region73: #{tpu_custom_call.1} parent=47 // pred_check
          %p346 = pneg %p174
        $region74: #{tpu_custom_call.1} parent=47 // pred_check_branch
          %348 = sbr.rel (%p346) target = $region76
        $region75: #{tpu_custom_call.1} parent=47 // pred_region
          %349 = dma.done [#allocation12], 128
        $region76: #{tpu_custom_call.1} parent=47 // pred_fallthru
          _
        %s350 = sand.u32 %s35, 1
        %s351 = scalar_lea.sflag [#allocation3], %s350
        %s352 = sand.u32 %s35, 1
        %s353 = smul.addr %s352, 16
        %s354 = scalar_lea.vmem [#allocation2], %s353
        %p355 = pneg %p48
        %p356 = pneg %p45
        %p357 = pneg %p69
        %p358 = pneg %p66
        %p359 = pneg %p90
        %p360 = pneg %p87
        %p361 = pneg %p111
        %p362 = pneg %p108
        %p363 = pneg %p132
        %p364 = pneg %p129
        %p365 = pneg %p153
        %p366 = pneg %p150
        %p367 = pneg %p174
        %p368 = pneg %p171
        %p369 = pneg %p200
        %p370 = pneg %p197
        %s371 = sand.u32 %s187, 1
        %s372 = scalar_lea.sflag [#allocation4], %s371
        %s373 = sand.u32 %s187, 1
        %s374 = smul.addr %s373, 64
        %s375 = scalar_lea.vmem [#allocation14], %s374
        %v376 = vld [vmem:[%s321] sm:$0xff]
        %v377 = vld [vmem:[%s321 + $0x8] sm:$0xff]
        %v378 = vld [vmem:[#allocation5] sm:$0xff]
        %v379 = vld [vmem:[#allocation5 + $0x8] sm:$0xff]
        %v380 = vld [vmem:[#allocation5 + $0x10] sm:$0xff]
        %v381 = vld [vmem:[#allocation5 + $0x18] sm:$0xff]
        %v382 = vld [vmem:[#allocation5 + $0x20] sm:$0xff]
        %v383 = vld [vmem:[#allocation5 + $0x28] sm:$0xff]
        %v384 = vld [vmem:[#allocation5 + $0x30] sm:$0xff]
        %v385 = vld [vmem:[#allocation5 + $0x38] sm:$0xff]
        %v386 = vld [vmem:[#allocation5 + $0x40] sm:$0xff]
        %v387 = vld [vmem:[#allocation5 + $0x48] sm:$0xff]
        %v388 = vld [vmem:[#allocation5 + $0x50] sm:$0xff]
        %v389 = vld [vmem:[#allocation5 + $0x58] sm:$0xff]
        %v390 = vld [vmem:[#allocation5 + $0x60] sm:$0xff]
        %v391 = vld [vmem:[#allocation5 + $0x68] sm:$0xff]
        %v392 = vld [vmem:[#allocation5 + $0x70] sm:$0xff]
        %v393 = vld [vmem:[#allocation5 + $0x78] sm:$0xff]
        %v394 = vld [vmem:[#allocation5 + $0x80] sm:$0xff]
        %v395 = vld [vmem:[#allocation5 + $0x88] sm:$0xff]
        %v396 = vld [vmem:[#allocation5 + $0x90] sm:$0xff]
        %v397 = vld [vmem:[#allocation5 + $0x98] sm:$0xff]
        %v398 = vld [vmem:[#allocation5 + $0xa0] sm:$0xff]
        %v399 = vld [vmem:[#allocation5 + $0xa8] sm:$0xff]
        %v400 = vld [vmem:[#allocation5 + $0xb0] sm:$0xff]
        %v401 = vld [vmem:[#allocation5 + $0xb8] sm:$0xff]
        %v402 = vld [vmem:[#allocation5 + $0xc0] sm:$0xff]
        %v403 = vld [vmem:[#allocation5 + $0xc8] sm:$0xff]
        %v404 = vld [vmem:[#allocation5 + $0xd0] sm:$0xff]
        %v405 = vld [vmem:[#allocation5 + $0xd8] sm:$0xff]
        %v406 = vld [vmem:[#allocation5 + $0xe0] sm:$0xff]
        %v407 = vld [vmem:[#allocation5 + $0xe8] sm:$0xff]
        %v408 = vld [vmem:[#allocation5 + $0xf0] sm:$0xff]
        %v409 = vld [vmem:[#allocation5 + $0xf8] sm:$0xff]
        %v410 = vld [vmem:[#allocation5 + $0x100] sm:$0xff]
        %v411 = vld [vmem:[#allocation5 + $0x108] sm:$0xff]
        %v412 = vld [vmem:[#allocation5 + $0x110] sm:$0xff]
        %v413 = vld [vmem:[#allocation5 + $0x118] sm:$0xff]
        %v414 = vld [vmem:[#allocation5 + $0x120] sm:$0xff]
        %v415 = vld [vmem:[#allocation5 + $0x128] sm:$0xff]
        %v416 = vld [vmem:[#allocation5 + $0x130] sm:$0xff]
        %v417 = vld [vmem:[#allocation5 + $0x138] sm:$0xff]
        %v418 = vld [vmem:[#allocation5 + $0x140] sm:$0xff]
        %v419 = vld [vmem:[#allocation5 + $0x148] sm:$0xff]
        %v420 = vld [vmem:[#allocation5 + $0x150] sm:$0xff]
        %v421 = vld [vmem:[#allocation5 + $0x158] sm:$0xff]
        %v422 = vld [vmem:[#allocation5 + $0x160] sm:$0xff]
        %v423 = vld [vmem:[#allocation5 + $0x168] sm:$0xff]
        %v424 = vld [vmem:[#allocation5 + $0x170] sm:$0xff]
        %v425 = vld [vmem:[#allocation5 + $0x178] sm:$0xff]
        %v426 = vld [vmem:[#allocation5 + $0x180] sm:$0xff]
        %v427 = vld [vmem:[#allocation5 + $0x188] sm:$0xff]
        %v428 = vld [vmem:[#allocation5 + $0x190] sm:$0xff]
        %v429 = vld [vmem:[#allocation5 + $0x198] sm:$0xff]
        %v430 = vld [vmem:[#allocation5 + $0x1a0] sm:$0xff]
        %v431 = vld [vmem:[#allocation5 + $0x1a8] sm:$0xff]
        %v432 = vld [vmem:[#allocation5 + $0x1b0] sm:$0xff]
        %v433 = vld [vmem:[#allocation5 + $0x1b8] sm:$0xff]
        %v434 = vld [vmem:[#allocation5 + $0x1c0] sm:$0xff]
        %v435 = vld [vmem:[#allocation5 + $0x1c8] sm:$0xff]
        %v436 = vld [vmem:[#allocation5 + $0x1d0] sm:$0xff]
        %v437 = vld [vmem:[#allocation5 + $0x1d8] sm:$0xff]
        %v438 = vld [vmem:[#allocation5 + $0x1e0] sm:$0xff]
        %v439 = vld [vmem:[#allocation5 + $0x1e8] sm:$0xff]
        %v440 = vld [vmem:[#allocation5 + $0x1f0] sm:$0xff]
        %v441 = vld [vmem:[#allocation5 + $0x1f8] sm:$0xff]
        %v442 = vld [vmem:[#allocation5 + $0x200] sm:$0xff]
        %v443 = vld [vmem:[#allocation5 + $0x208] sm:$0xff]
        %v444 = vld [vmem:[#allocation5 + $0x210] sm:$0xff]
        %v445 = vld [vmem:[#allocation5 + $0x218] sm:$0xff]
        %v446 = vld [vmem:[#allocation5 + $0x220] sm:$0xff]
        %v447 = vld [vmem:[#allocation5 + $0x228] sm:$0xff]
        %v448 = vld [vmem:[#allocation5 + $0x230] sm:$0xff]
        %v449 = vld [vmem:[#allocation5 + $0x238] sm:$0xff]
        %v450 = vld [vmem:[#allocation5 + $0x240] sm:$0xff]
        %v451 = vld [vmem:[#allocation5 + $0x248] sm:$0xff]
        %v452 = vld [vmem:[#allocation5 + $0x250] sm:$0xff]
        %v453 = vld [vmem:[#allocation5 + $0x258] sm:$0xff]
        %v454 = vld [vmem:[#allocation5 + $0x260] sm:$0xff]
        %v455 = vld [vmem:[#allocation5 + $0x268] sm:$0xff]
        %v456 = vld [vmem:[#allocation5 + $0x270] sm:$0xff]
        %v457 = vld [vmem:[#allocation5 + $0x278] sm:$0xff]
        %v458 = vld [vmem:[#allocation5 + $0x280] sm:$0xff]
        %v459 = vld [vmem:[#allocation5 + $0x288] sm:$0xff]
        %v460 = vld [vmem:[#allocation5 + $0x290] sm:$0xff]
        %v461 = vld [vmem:[#allocation5 + $0x298] sm:$0xff]
        %v462 = vld [vmem:[#allocation5 + $0x2a0] sm:$0xff]
        %v463 = vld [vmem:[#allocation5 + $0x2a8] sm:$0xff]
        %v464 = vld [vmem:[#allocation5 + $0x2b0] sm:$0xff]
        %v465 = vld [vmem:[#allocation5 + $0x2b8] sm:$0xff]
        %v466 = vld [vmem:[#allocation5 + $0x2c0] sm:$0xff]
        %v467 = vld [vmem:[#allocation5 + $0x2c8] sm:$0xff]
        %v468 = vld [vmem:[#allocation5 + $0x2d0] sm:$0xff]
        %v469 = vld [vmem:[#allocation5 + $0x2d8] sm:$0xff]
        %v470 = vld [vmem:[#allocation5 + $0x2e0] sm:$0xff]
        %v471 = vld [vmem:[#allocation5 + $0x2e8] sm:$0xff]
        %v472 = vld [vmem:[#allocation5 + $0x2f0] sm:$0xff]
        %v473 = vld [vmem:[#allocation5 + $0x2f8] sm:$0xff]
        %v474 = vld [vmem:[#allocation5 + $0x300] sm:$0xff]
        %v475 = vld [vmem:[#allocation5 + $0x308] sm:$0xff]
        %v476 = vld [vmem:[#allocation5 + $0x310] sm:$0xff]
        %v477 = vld [vmem:[#allocation5 + $0x318] sm:$0xff]
        %v478 = vld [vmem:[#allocation5 + $0x320] sm:$0xff]
        %v479 = vld [vmem:[#allocation5 + $0x328] sm:$0xff]
        %v480 = vld [vmem:[#allocation5 + $0x330] sm:$0xff]
        %v481 = vld [vmem:[#allocation5 + $0x338] sm:$0xff]
        %v482 = vld [vmem:[#allocation5 + $0x340] sm:$0xff]
        %v483 = vld [vmem:[#allocation5 + $0x348] sm:$0xff]
        %v484 = vld [vmem:[#allocation5 + $0x350] sm:$0xff]
        %v485 = vld [vmem:[#allocation5 + $0x358] sm:$0xff]
        %v486 = vld [vmem:[#allocation5 + $0x360] sm:$0xff]
        %v487 = vld [vmem:[#allocation5 + $0x368] sm:$0xff]
        %v488 = vld [vmem:[#allocation5 + $0x370] sm:$0xff]
        %v489 = vld [vmem:[#allocation5 + $0x378] sm:$0xff]
        %v490 = vld [vmem:[#allocation5 + $0x380] sm:$0xff]
        %v491 = vld [vmem:[#allocation5 + $0x388] sm:$0xff]
        %v492 = vld [vmem:[#allocation5 + $0x390] sm:$0xff]
        %v493 = vld [vmem:[#allocation5 + $0x398] sm:$0xff]
        %v494 = vld [vmem:[#allocation5 + $0x3a0] sm:$0xff]
        %v495 = vld [vmem:[#allocation5 + $0x3a8] sm:$0xff]
        %v496 = vld [vmem:[#allocation5 + $0x3b0] sm:$0xff]
        %v497 = vld [vmem:[#allocation5 + $0x3b8] sm:$0xff]
        %v498 = vld [vmem:[#allocation5 + $0x3c0] sm:$0xff]
        %v499 = vld [vmem:[#allocation5 + $0x3c8] sm:$0xff]
        %v500 = vld [vmem:[#allocation5 + $0x3d0] sm:$0xff]
        %v501 = vld [vmem:[#allocation5 + $0x3d8] sm:$0xff]
        %v502 = vld [vmem:[#allocation5 + $0x3e0] sm:$0xff]
        %v503 = vld [vmem:[#allocation5 + $0x3e8] sm:$0xff]
        %v504 = vld [vmem:[#allocation5 + $0x3f0] sm:$0xff]
        %v505 = vld [vmem:[#allocation5 + $0x3f8] sm:$0xff]
        %v506 = vld [vmem:[#allocation7] sm:$0xf]
        %v508 = vlaneseq
        %v509 = vshrl.u32 %v508, 7
        %v510 = vsub.s32 0, %v509
        %v511 = vrot.slane %v506, %v510
        %v512 = vlaneseq
        %v513 = vshrl.u32 %v512, 7
        %v514 = vsub.s32 1, %v513
        %v515 = vrot.slane %v506, %v514
        %v516 = vlaneseq
        %v517 = vshrl.u32 %v516, 7
        %v518 = vsub.s32 2, %v517
        %v519 = vrot.slane %v506, %v518
        %v520 = vlaneseq
        %v521 = vshrl.u32 %v520, 7
        %v522 = vsub.s32 3, %v521
        %v523 = vrot.slane %v506, %v522
        %v530 = vunpack.c.l.b16 %v376
        %v531 = vunpack.c.h.b16 %v376
        %v532 = vunpack.c.l.b16 %v377
        %v533 = vunpack.c.h.b16 %v377
        %v534 = vpack.c.b16 %v530, %v530
        %v535 = vpack.c.b16 %v531, %v531
        %v536 = vpack.c.b16 %v532, %v532
        %v537 = vpack.c.b16 %v533, %v533
        %v670 = vunpack.c.l.b16 %v378
        %v671 = vunpack.c.h.b16 %v378
        %v672 = vunpack.c.l.b16 %v379
        %v673 = vunpack.c.h.b16 %v379
        %v674 = vunpack.c.l.b16 %v380
        %v675 = vunpack.c.h.b16 %v380
        %v676 = vunpack.c.l.b16 %v381
        %v677 = vunpack.c.h.b16 %v381
        %v678 = vunpack.c.l.b16 %v382
        %v679 = vunpack.c.h.b16 %v382
        %v680 = vunpack.c.l.b16 %v383
        %v681 = vunpack.c.h.b16 %v383
        %v682 = vunpack.c.l.b16 %v384
        %v683 = vunpack.c.h.b16 %v384
        %v684 = vunpack.c.l.b16 %v385
        %v685 = vunpack.c.h.b16 %v385
        %v686 = vunpack.c.l.b16 %v386
        %v687 = vunpack.c.h.b16 %v386
        %v688 = vunpack.c.l.b16 %v387
        %v689 = vunpack.c.h.b16 %v387
        %v690 = vunpack.c.l.b16 %v388
        %v691 = vunpack.c.h.b16 %v388
        %v692 = vunpack.c.l.b16 %v389
        %v693 = vunpack.c.h.b16 %v389
        %v694 = vunpack.c.l.b16 %v390
        %v695 = vunpack.c.h.b16 %v390
        %v696 = vunpack.c.l.b16 %v391
        %v697 = vunpack.c.h.b16 %v391
        %v698 = vunpack.c.l.b16 %v392
        %v699 = vunpack.c.h.b16 %v392
        %v700 = vunpack.c.l.b16 %v393
        %v701 = vunpack.c.h.b16 %v393
        %v702 = vunpack.c.l.b16 %v394
        %v703 = vunpack.c.h.b16 %v394
        %v704 = vunpack.c.l.b16 %v395
        %v705 = vunpack.c.h.b16 %v395
        %v706 = vunpack.c.l.b16 %v396
        %v707 = vunpack.c.h.b16 %v396
        %v708 = vunpack.c.l.b16 %v397
        %v709 = vunpack.c.h.b16 %v397
        %v710 = vunpack.c.l.b16 %v398
        %v711 = vunpack.c.h.b16 %v398
        %v712 = vunpack.c.l.b16 %v399
        %v713 = vunpack.c.h.b16 %v399
        %v714 = vunpack.c.l.b16 %v400
        %v715 = vunpack.c.h.b16 %v400
        %v716 = vunpack.c.l.b16 %v401
        %v717 = vunpack.c.h.b16 %v401
        %v718 = vunpack.c.l.b16 %v402
        %v719 = vunpack.c.h.b16 %v402
        %v720 = vunpack.c.l.b16 %v403
        %v721 = vunpack.c.h.b16 %v403
        %v722 = vunpack.c.l.b16 %v404
        %v723 = vunpack.c.h.b16 %v404
        %v724 = vunpack.c.l.b16 %v405
        %v725 = vunpack.c.h.b16 %v405
        %v726 = vunpack.c.l.b16 %v406
        %v727 = vunpack.c.h.b16 %v406
        %v728 = vunpack.c.l.b16 %v407
        %v729 = vunpack.c.h.b16 %v407
        %v730 = vunpack.c.l.b16 %v408
        %v731 = vunpack.c.h.b16 %v408
        %v732 = vunpack.c.l.b16 %v409
        %v733 = vunpack.c.h.b16 %v409
        %v734 = vunpack.c.l.b16 %v410
        %v735 = vunpack.c.h.b16 %v410
        %v736 = vunpack.c.l.b16 %v411
        %v737 = vunpack.c.h.b16 %v411
        %v738 = vunpack.c.l.b16 %v412
        %v739 = vunpack.c.h.b16 %v412
        %v740 = vunpack.c.l.b16 %v413
        %v741 = vunpack.c.h.b16 %v413
        %v742 = vunpack.c.l.b16 %v414
        %v743 = vunpack.c.h.b16 %v414
        %v744 = vunpack.c.l.b16 %v415
        %v745 = vunpack.c.h.b16 %v415
        %v746 = vunpack.c.l.b16 %v416
        %v747 = vunpack.c.h.b16 %v416
        %v748 = vunpack.c.l.b16 %v417
        %v749 = vunpack.c.h.b16 %v417
        %v750 = vunpack.c.l.b16 %v418
        %v751 = vunpack.c.h.b16 %v418
        %v752 = vunpack.c.l.b16 %v419
        %v753 = vunpack.c.h.b16 %v419
        %v754 = vunpack.c.l.b16 %v420
        %v755 = vunpack.c.h.b16 %v420
        %v756 = vunpack.c.l.b16 %v421
        %v757 = vunpack.c.h.b16 %v421
        %v758 = vunpack.c.l.b16 %v422
        %v759 = vunpack.c.h.b16 %v422
        %v760 = vunpack.c.l.b16 %v423
        %v761 = vunpack.c.h.b16 %v423
        %v762 = vunpack.c.l.b16 %v424
        %v763 = vunpack.c.h.b16 %v424
        %v764 = vunpack.c.l.b16 %v425
        %v765 = vunpack.c.h.b16 %v425
        %v766 = vunpack.c.l.b16 %v426
        %v767 = vunpack.c.h.b16 %v426
        %v768 = vunpack.c.l.b16 %v427
        %v769 = vunpack.c.h.b16 %v427
        %v770 = vunpack.c.l.b16 %v428
        %v771 = vunpack.c.h.b16 %v428
        %v772 = vunpack.c.l.b16 %v429
        %v773 = vunpack.c.h.b16 %v429
        %v774 = vunpack.c.l.b16 %v430
        %v775 = vunpack.c.h.b16 %v430
        %v776 = vunpack.c.l.b16 %v431
        %v777 = vunpack.c.h.b16 %v431
        %v778 = vunpack.c.l.b16 %v432
        %v779 = vunpack.c.h.b16 %v432
        %v780 = vunpack.c.l.b16 %v433
        %v781 = vunpack.c.h.b16 %v433
        %v782 = vunpack.c.l.b16 %v434
        %v783 = vunpack.c.h.b16 %v434
        %v784 = vunpack.c.l.b16 %v435
        %v785 = vunpack.c.h.b16 %v435
        %v786 = vunpack.c.l.b16 %v436
        %v787 = vunpack.c.h.b16 %v436
        %v788 = vunpack.c.l.b16 %v437
        %v789 = vunpack.c.h.b16 %v437
        %v790 = vunpack.c.l.b16 %v438
        %v791 = vunpack.c.h.b16 %v438
        %v792 = vunpack.c.l.b16 %v439
        %v793 = vunpack.c.h.b16 %v439
        %v794 = vunpack.c.l.b16 %v440
        %v795 = vunpack.c.h.b16 %v440
        %v796 = vunpack.c.l.b16 %v441
        %v797 = vunpack.c.h.b16 %v441
        %v798 = vunpack.c.l.b16 %v442
        %v799 = vunpack.c.h.b16 %v442
        %v800 = vunpack.c.l.b16 %v443
        %v801 = vunpack.c.h.b16 %v443
        %v802 = vunpack.c.l.b16 %v444
        %v803 = vunpack.c.h.b16 %v444
        %v804 = vunpack.c.l.b16 %v445
        %v805 = vunpack.c.h.b16 %v445
        %v806 = vunpack.c.l.b16 %v446
        %v807 = vunpack.c.h.b16 %v446
        %v808 = vunpack.c.l.b16 %v447
        %v809 = vunpack.c.h.b16 %v447
        %v810 = vunpack.c.l.b16 %v448
        %v811 = vunpack.c.h.b16 %v448
        %v812 = vunpack.c.l.b16 %v449
        %v813 = vunpack.c.h.b16 %v449
        %v814 = vunpack.c.l.b16 %v450
        %v815 = vunpack.c.h.b16 %v450
        %v816 = vunpack.c.l.b16 %v451
        %v817 = vunpack.c.h.b16 %v451
        %v818 = vunpack.c.l.b16 %v452
        %v819 = vunpack.c.h.b16 %v452
        %v820 = vunpack.c.l.b16 %v453
        %v821 = vunpack.c.h.b16 %v453
        %v822 = vunpack.c.l.b16 %v454
        %v823 = vunpack.c.h.b16 %v454
        %v824 = vunpack.c.l.b16 %v455
        %v825 = vunpack.c.h.b16 %v455
        %v826 = vunpack.c.l.b16 %v456
        %v827 = vunpack.c.h.b16 %v456
        %v828 = vunpack.c.l.b16 %v457
        %v829 = vunpack.c.h.b16 %v457
        %v830 = vunpack.c.l.b16 %v458
        %v831 = vunpack.c.h.b16 %v458
        %v832 = vunpack.c.l.b16 %v459
        %v833 = vunpack.c.h.b16 %v459
        %v834 = vunpack.c.l.b16 %v460
        %v835 = vunpack.c.h.b16 %v460
        %v836 = vunpack.c.l.b16 %v461
        %v837 = vunpack.c.h.b16 %v461
        %v838 = vunpack.c.l.b16 %v462
        %v839 = vunpack.c.h.b16 %v462
        %v840 = vunpack.c.l.b16 %v463
        %v841 = vunpack.c.h.b16 %v463
        %v842 = vunpack.c.l.b16 %v464
        %v843 = vunpack.c.h.b16 %v464
        %v844 = vunpack.c.l.b16 %v465
        %v845 = vunpack.c.h.b16 %v465
        %v846 = vunpack.c.l.b16 %v466
        %v847 = vunpack.c.h.b16 %v466
        %v848 = vunpack.c.l.b16 %v467
        %v849 = vunpack.c.h.b16 %v467
        %v850 = vunpack.c.l.b16 %v468
        %v851 = vunpack.c.h.b16 %v468
        %v852 = vunpack.c.l.b16 %v469
        %v853 = vunpack.c.h.b16 %v469
        %v854 = vunpack.c.l.b16 %v470
        %v855 = vunpack.c.h.b16 %v470
        %v856 = vunpack.c.l.b16 %v471
        %v857 = vunpack.c.h.b16 %v471
        %v858 = vunpack.c.l.b16 %v472
        %v859 = vunpack.c.h.b16 %v472
        %v860 = vunpack.c.l.b16 %v473
        %v861 = vunpack.c.h.b16 %v473
        %v862 = vunpack.c.l.b16 %v474
        %v863 = vunpack.c.h.b16 %v474
        %v864 = vunpack.c.l.b16 %v475
        %v865 = vunpack.c.h.b16 %v475
        %v866 = vunpack.c.l.b16 %v476
        %v867 = vunpack.c.h.b16 %v476
        %v868 = vunpack.c.l.b16 %v477
        %v869 = vunpack.c.h.b16 %v477
        %v870 = vunpack.c.l.b16 %v478
        %v871 = vunpack.c.h.b16 %v478
        %v872 = vunpack.c.l.b16 %v479
        %v873 = vunpack.c.h.b16 %v479
        %v874 = vunpack.c.l.b16 %v480
        %v875 = vunpack.c.h.b16 %v480
        %v876 = vunpack.c.l.b16 %v481
        %v877 = vunpack.c.h.b16 %v481
        %v878 = vunpack.c.l.b16 %v482
        %v879 = vunpack.c.h.b16 %v482
        %v880 = vunpack.c.l.b16 %v483
        %v881 = vunpack.c.h.b16 %v483
        %v882 = vunpack.c.l.b16 %v484
        %v883 = vunpack.c.h.b16 %v484
        %v884 = vunpack.c.l.b16 %v485
        %v885 = vunpack.c.h.b16 %v485
        %v886 = vunpack.c.l.b16 %v486
        %v887 = vunpack.c.h.b16 %v486
        %v888 = vunpack.c.l.b16 %v487
        %v889 = vunpack.c.h.b16 %v487
        %v890 = vunpack.c.l.b16 %v488
        %v891 = vunpack.c.h.b16 %v488
        %v892 = vunpack.c.l.b16 %v489
        %v893 = vunpack.c.h.b16 %v489
        %v894 = vunpack.c.l.b16 %v490
        %v895 = vunpack.c.h.b16 %v490
        %v896 = vunpack.c.l.b16 %v491
        %v897 = vunpack.c.h.b16 %v491
        %v898 = vunpack.c.l.b16 %v492
        %v899 = vunpack.c.h.b16 %v492
        %v900 = vunpack.c.l.b16 %v493
        %v901 = vunpack.c.h.b16 %v493
        %v902 = vunpack.c.l.b16 %v494
        %v903 = vunpack.c.h.b16 %v494
        %v904 = vunpack.c.l.b16 %v495
        %v905 = vunpack.c.h.b16 %v495
        %v906 = vunpack.c.l.b16 %v496
        %v907 = vunpack.c.h.b16 %v496
        %v908 = vunpack.c.l.b16 %v497
        %v909 = vunpack.c.h.b16 %v497
        %v910 = vunpack.c.l.b16 %v498
        %v911 = vunpack.c.h.b16 %v498
        %v912 = vunpack.c.l.b16 %v499
        %v913 = vunpack.c.h.b16 %v499
        %v914 = vunpack.c.l.b16 %v500
        %v915 = vunpack.c.h.b16 %v500
        %v916 = vunpack.c.l.b16 %v501
        %v917 = vunpack.c.h.b16 %v501
        %v918 = vunpack.c.l.b16 %v502
        %v919 = vunpack.c.h.b16 %v502
        %v920 = vunpack.c.l.b16 %v503
        %v921 = vunpack.c.h.b16 %v503
        %v922 = vunpack.c.l.b16 %v504
        %v923 = vunpack.c.h.b16 %v504
        %v924 = vunpack.c.l.b16 %v505
        %v925 = vunpack.c.h.b16 %v505
        %v926 = vpack.c.b16 %v674, %v670
        %v927 = vpack.c.b16 %v675, %v671
        %v928 = vpack.c.b16 %v676, %v672
        %v929 = vpack.c.b16 %v677, %v673
        %v930 = vpack.c.b16 %v682, %v678
        %v931 = vpack.c.b16 %v683, %v679
        %v932 = vpack.c.b16 %v684, %v680
        %v933 = vpack.c.b16 %v685, %v681
        %v934 = vpack.c.b16 %v690, %v686
        %v935 = vpack.c.b16 %v691, %v687
        %v936 = vpack.c.b16 %v692, %v688
        %v937 = vpack.c.b16 %v693, %v689
        %v938 = vpack.c.b16 %v698, %v694
        %v939 = vpack.c.b16 %v699, %v695
        %v940 = vpack.c.b16 %v700, %v696
        %v941 = vpack.c.b16 %v701, %v697
        %v942 = vpack.c.b16 %v706, %v702
        %v943 = vpack.c.b16 %v707, %v703
        %v944 = vpack.c.b16 %v708, %v704
        %v945 = vpack.c.b16 %v709, %v705
        %v946 = vpack.c.b16 %v714, %v710
        %v947 = vpack.c.b16 %v715, %v711
        %v948 = vpack.c.b16 %v716, %v712
        %v949 = vpack.c.b16 %v717, %v713
        %v950 = vpack.c.b16 %v722, %v718
        %v951 = vpack.c.b16 %v723, %v719
        %v952 = vpack.c.b16 %v724, %v720
        %v953 = vpack.c.b16 %v725, %v721
        %v954 = vpack.c.b16 %v730, %v726
        %v955 = vpack.c.b16 %v731, %v727
        %v956 = vpack.c.b16 %v732, %v728
        %v957 = vpack.c.b16 %v733, %v729
        %v958 = vpack.c.b16 %v738, %v734
        %v959 = vpack.c.b16 %v739, %v735
        %v960 = vpack.c.b16 %v740, %v736
        %v961 = vpack.c.b16 %v741, %v737
        %v962 = vpack.c.b16 %v746, %v742
        %v963 = vpack.c.b16 %v747, %v743
        %v964 = vpack.c.b16 %v748, %v744
        %v965 = vpack.c.b16 %v749, %v745
        %v966 = vpack.c.b16 %v754, %v750
        %v967 = vpack.c.b16 %v755, %v751
        %v968 = vpack.c.b16 %v756, %v752
        %v969 = vpack.c.b16 %v757, %v753
        %v970 = vpack.c.b16 %v762, %v758
        %v971 = vpack.c.b16 %v763, %v759
        %v972 = vpack.c.b16 %v764, %v760
        %v973 = vpack.c.b16 %v765, %v761
        %v974 = vpack.c.b16 %v770, %v766
        %v975 = vpack.c.b16 %v771, %v767
        %v976 = vpack.c.b16 %v772, %v768
        %v977 = vpack.c.b16 %v773, %v769
        %v978 = vpack.c.b16 %v778, %v774
        %v979 = vpack.c.b16 %v779, %v775
        %v980 = vpack.c.b16 %v780, %v776
        %v981 = vpack.c.b16 %v781, %v777
        %v982 = vpack.c.b16 %v786, %v782
        %v983 = vpack.c.b16 %v787, %v783
        %v984 = vpack.c.b16 %v788, %v784
        %v985 = vpack.c.b16 %v789, %v785
        %v986 = vpack.c.b16 %v794, %v790
        %v987 = vpack.c.b16 %v795, %v791
        %v988 = vpack.c.b16 %v796, %v792
        %v989 = vpack.c.b16 %v797, %v793
        %v990 = vpack.c.b16 %v802, %v798
        %v991 = vpack.c.b16 %v803, %v799
        %v992 = vpack.c.b16 %v804, %v800
        %v993 = vpack.c.b16 %v805, %v801
        %v994 = vpack.c.b16 %v810, %v806
        %v995 = vpack.c.b16 %v811, %v807
        %v996 = vpack.c.b16 %v812, %v808
        %v997 = vpack.c.b16 %v813, %v809
        %v998 = vpack.c.b16 %v818, %v814
        %v999 = vpack.c.b16 %v819, %v815
        %v1000 = vpack.c.b16 %v820, %v816
        %v1001 = vpack.c.b16 %v821, %v817
        %v1002 = vpack.c.b16 %v826, %v822
        %v1003 = vpack.c.b16 %v827, %v823
        %v1004 = vpack.c.b16 %v828, %v824
        %v1005 = vpack.c.b16 %v829, %v825
        %v1006 = vpack.c.b16 %v834, %v830
        %v1007 = vpack.c.b16 %v835, %v831
        %v1008 = vpack.c.b16 %v836, %v832
        %v1009 = vpack.c.b16 %v837, %v833
        %v1010 = vpack.c.b16 %v842, %v838
        %v1011 = vpack.c.b16 %v843, %v839
        %v1012 = vpack.c.b16 %v844, %v840
        %v1013 = vpack.c.b16 %v845, %v841
        %v1014 = vpack.c.b16 %v850, %v846
        %v1015 = vpack.c.b16 %v851, %v847
        %v1016 = vpack.c.b16 %v852, %v848
        %v1017 = vpack.c.b16 %v853, %v849
        %v1018 = vpack.c.b16 %v858, %v854
        %v1019 = vpack.c.b16 %v859, %v855
        %v1020 = vpack.c.b16 %v860, %v856
        %v1021 = vpack.c.b16 %v861, %v857
        %v1022 = vpack.c.b16 %v866, %v862
        %v1023 = vpack.c.b16 %v867, %v863
        %v1024 = vpack.c.b16 %v868, %v864
        %v1025 = vpack.c.b16 %v869, %v865
        %v1026 = vpack.c.b16 %v874, %v870
        %v1027 = vpack.c.b16 %v875, %v871
        %v1028 = vpack.c.b16 %v876, %v872
        %v1029 = vpack.c.b16 %v877, %v873
        %v1030 = vpack.c.b16 %v882, %v878
        %v1031 = vpack.c.b16 %v883, %v879
        %v1032 = vpack.c.b16 %v884, %v880
        %v1033 = vpack.c.b16 %v885, %v881
        %v1034 = vpack.c.b16 %v890, %v886
        %v1035 = vpack.c.b16 %v891, %v887
        %v1036 = vpack.c.b16 %v892, %v888
        %v1037 = vpack.c.b16 %v893, %v889
        %v1038 = vpack.c.b16 %v898, %v894
        %v1039 = vpack.c.b16 %v899, %v895
        %v1040 = vpack.c.b16 %v900, %v896
        %v1041 = vpack.c.b16 %v901, %v897
        %v1042 = vpack.c.b16 %v906, %v902
        %v1043 = vpack.c.b16 %v907, %v903
        %v1044 = vpack.c.b16 %v908, %v904
        %v1045 = vpack.c.b16 %v909, %v905
        %v1046 = vpack.c.b16 %v914, %v910
        %v1047 = vpack.c.b16 %v915, %v911
        %v1048 = vpack.c.b16 %v916, %v912
        %v1049 = vpack.c.b16 %v917, %v913
        %v1050 = vpack.c.b16 %v922, %v918
        %v1051 = vpack.c.b16 %v923, %v919
        %v1052 = vpack.c.b16 %v924, %v920
        %v1053 = vpack.c.b16 %v925, %v921
        %1182 = vmatprep.subr.bf16.mxu0 %v927
        %1183 = vmatpush1.bf16.msra.mxu0 %v926
        %1184 = vmatprep.subr.bf16.mxu0 %v931
        %1185 = vmatpush1.bf16.msra.mxu0 %v930
        %1186 = vmatprep.subr.bf16.mxu0 %v935
        %1187 = vmatpush1.bf16.msra.mxu0 %v934
        %1188 = vmatprep.subr.bf16.mxu0 %v939
        %1189 = vmatpush1.bf16.msra.mxu0 %v938
        %1190 = vmatprep.subr.bf16.mxu0 %v943
        %1191 = vmatpush1.bf16.msra.mxu0 %v942
        %1192 = vmatprep.subr.bf16.mxu0 %v947
        %1193 = vmatpush1.bf16.msra.mxu0 %v946
        %1194 = vmatprep.subr.bf16.mxu0 %v951
        %1195 = vmatpush1.bf16.msra.mxu0 %v950
        %1196 = vmatprep.subr.bf16.mxu0 %v955
        %1197 = vmatpush1.bf16.msra.mxu0 %v954
        %1198 = vmatprep.subr.bf16.mxu0 %v959
        %1199 = vmatpush1.bf16.msra.mxu0 %v958
        %1200 = vmatprep.subr.bf16.mxu0 %v963
        %1201 = vmatpush1.bf16.msra.mxu0 %v962
        %1202 = vmatprep.subr.bf16.mxu0 %v967
        %1203 = vmatpush1.bf16.msra.mxu0 %v966
        %1204 = vmatprep.subr.bf16.mxu0 %v971
        %1205 = vmatpush1.bf16.msra.mxu0 %v970
        %1206 = vmatprep.subr.bf16.mxu0 %v975
        %1207 = vmatpush1.bf16.msra.mxu0 %v974
        %1208 = vmatprep.subr.bf16.mxu0 %v979
        %1209 = vmatpush1.bf16.msra.mxu0 %v978
        %1210 = vmatprep.subr.bf16.mxu0 %v983
        %1211 = vmatpush1.bf16.msra.mxu0 %v982
        %1212 = vmatprep.subr.bf16.mxu0 %v987
        %1213 = vmatpush1.bf16.msra.mxu0 %v986
        %1214 = vmatprep.mubr.bf16.mxu0 %v535
        %1215 = vmatmul.mubr.bf16.gmra.mrb[0].mxu0 %v534
        %v1216 = vpop.f32.mrb[0].mxu0
        %v1217 = vadd.f32 %v511, %v1216
        %v1218 = vpop.f32.mrb[0].mxu0
        %v1219 = vadd.f32 %v515, %v1218
        %v1220 = vpop.f32.mrb[0].mxu0
        %v1221 = vpop.f32.mrb[0].mxu0
        %1222 = vdwg.mxu0
        %1223 = vmatprep.subr.bf16.mxu0 %v991
        %1224 = vmatpush1.bf16.msra.mxu0 %v990
        %1225 = vmatprep.subr.bf16.mxu0 %v995
        %1226 = vmatpush1.bf16.msra.mxu0 %v994
        %1227 = vmatprep.subr.bf16.mxu0 %v999
        %1228 = vmatpush1.bf16.msra.mxu0 %v998
        %1229 = vmatprep.subr.bf16.mxu0 %v1003
        %1230 = vmatpush1.bf16.msra.mxu0 %v1002
        %1231 = vmatprep.subr.bf16.mxu0 %v1007
        %1232 = vmatpush1.bf16.msra.mxu0 %v1006
        %1233 = vmatprep.subr.bf16.mxu0 %v1011
        %1234 = vmatpush1.bf16.msra.mxu0 %v1010
        %1235 = vmatprep.subr.bf16.mxu0 %v1015
        %1236 = vmatpush1.bf16.msra.mxu0 %v1014
        %1237 = vmatprep.subr.bf16.mxu0 %v1019
        %1238 = vmatpush1.bf16.msra.mxu0 %v1018
        %1239 = vmatprep.subr.bf16.mxu0 %v1023
        %1240 = vmatpush1.bf16.msra.mxu0 %v1022
        %1241 = vmatprep.subr.bf16.mxu0 %v1027
        %1242 = vmatpush1.bf16.msra.mxu0 %v1026
        %1243 = vmatprep.subr.bf16.mxu0 %v1031
        %1244 = vmatpush1.bf16.msra.mxu0 %v1030
        %1245 = vmatprep.subr.bf16.mxu0 %v1035
        %1246 = vmatpush1.bf16.msra.mxu0 %v1034
        %1247 = vmatprep.subr.bf16.mxu0 %v1039
        %1248 = vmatpush1.bf16.msra.mxu0 %v1038
        %1249 = vmatprep.subr.bf16.mxu0 %v1043
        %1250 = vmatpush1.bf16.msra.mxu0 %v1042
        %1251 = vmatprep.subr.bf16.mxu0 %v1047
        %1252 = vmatpush1.bf16.msra.mxu0 %v1046
        %1253 = vmatprep.subr.bf16.mxu0 %v1051
        %1254 = vmatpush1.bf16.msra.mxu0 %v1050
        %1255 = vmatprep.mubr.bf16.mxu0 %v537
        %1256 = vmatmul.mubr.bf16.gmra.mrb[0].mxu0 %v536
        %v1257 = vpop.f32.mrb[0].mxu0
        %v1258 = vadd.f32 %v1217, %v1257
        %v1259 = vpop.f32.mrb[0].mxu0
        %v1260 = vadd.f32 %v1219, %v1259
        %v1261 = vpop.f32.mrb[0].mxu0
        %v1262 = vpop.f32.mrb[0].mxu0
        %1263 = vdwg.mxu0
        %1264 = vmatprep.subr.bf16.mxu0 %v929
        %1265 = vmatpush1.bf16.msra.mxu0 %v928
        %1266 = vmatprep.subr.bf16.mxu0 %v933
        %1267 = vmatpush1.bf16.msra.mxu0 %v932
        %1268 = vmatprep.subr.bf16.mxu0 %v937
        %1269 = vmatpush1.bf16.msra.mxu0 %v936
        %1270 = vmatprep.subr.bf16.mxu0 %v941
        %1271 = vmatpush1.bf16.msra.mxu0 %v940
        %1272 = vmatprep.subr.bf16.mxu0 %v945
        %1273 = vmatpush1.bf16.msra.mxu0 %v944
        %1274 = vmatprep.subr.bf16.mxu0 %v949
        %1275 = vmatpush1.bf16.msra.mxu0 %v948
        %1276 = vmatprep.subr.bf16.mxu0 %v953
        %1277 = vmatpush1.bf16.msra.mxu0 %v952
        %1278 = vmatprep.subr.bf16.mxu0 %v957
        %1279 = vmatpush1.bf16.msra.mxu0 %v956
        %1280 = vmatprep.subr.bf16.mxu0 %v961
        %1281 = vmatpush1.bf16.msra.mxu0 %v960
        %1282 = vmatprep.subr.bf16.mxu0 %v965
        %1283 = vmatpush1.bf16.msra.mxu0 %v964
        %1284 = vmatprep.subr.bf16.mxu0 %v969
        %1285 = vmatpush1.bf16.msra.mxu0 %v968
        %1286 = vmatprep.subr.bf16.mxu0 %v973
        %1287 = vmatpush1.bf16.msra.mxu0 %v972
        %1288 = vmatprep.subr.bf16.mxu0 %v977
        %1289 = vmatpush1.bf16.msra.mxu0 %v976
        %1290 = vmatprep.subr.bf16.mxu0 %v981
        %1291 = vmatpush1.bf16.msra.mxu0 %v980
        %1292 = vmatprep.subr.bf16.mxu0 %v985
        %1293 = vmatpush1.bf16.msra.mxu0 %v984
        %1294 = vmatprep.subr.bf16.mxu0 %v989
        %1295 = vmatpush1.bf16.msra.mxu0 %v988
        %1296 = vmatprep.mubr.bf16.mxu0 %v535
        %1297 = vmatmul.mubr.bf16.gmra.mrb[0].mxu0 %v534
        %v1298 = vpop.f32.mrb[0].mxu0
        %v1299 = vadd.f32 %v519, %v1298
        %v1300 = vpop.f32.mrb[0].mxu0
        %v1301 = vadd.f32 %v523, %v1300
        %v1302 = vpop.f32.mrb[0].mxu0
        %v1303 = vpop.f32.mrb[0].mxu0
        %1304 = vdwg.mxu0
        %1305 = vmatprep.subr.bf16.mxu0 %v993
        %1306 = vmatpush1.bf16.msra.mxu0 %v992
        %1307 = vmatprep.subr.bf16.mxu0 %v997
        %1308 = vmatpush1.bf16.msra.mxu0 %v996
        %1309 = vmatprep.subr.bf16.mxu0 %v1001
        %1310 = vmatpush1.bf16.msra.mxu0 %v1000
        %1311 = vmatprep.subr.bf16.mxu0 %v1005
        %1312 = vmatpush1.bf16.msra.mxu0 %v1004
        %1313 = vmatprep.subr.bf16.mxu0 %v1009
        %1314 = vmatpush1.bf16.msra.mxu0 %v1008
        %1315 = vmatprep.subr.bf16.mxu0 %v1013
        %1316 = vmatpush1.bf16.msra.mxu0 %v1012
        %1317 = vmatprep.subr.bf16.mxu0 %v1017
        %1318 = vmatpush1.bf16.msra.mxu0 %v1016
        %1319 = vmatprep.subr.bf16.mxu0 %v1021
        %1320 = vmatpush1.bf16.msra.mxu0 %v1020
        %1321 = vmatprep.subr.bf16.mxu0 %v1025
        %1322 = vmatpush1.bf16.msra.mxu0 %v1024
        %1323 = vmatprep.subr.bf16.mxu0 %v1029
        %1324 = vmatpush1.bf16.msra.mxu0 %v1028
        %1325 = vmatprep.subr.bf16.mxu0 %v1033
        %1326 = vmatpush1.bf16.msra.mxu0 %v1032
        %1327 = vmatprep.subr.bf16.mxu0 %v1037
        %1328 = vmatpush1.bf16.msra.mxu0 %v1036
        %1329 = vmatprep.subr.bf16.mxu0 %v1041
        %1330 = vmatpush1.bf16.msra.mxu0 %v1040
        %1331 = vmatprep.subr.bf16.mxu0 %v1045
        %1332 = vmatpush1.bf16.msra.mxu0 %v1044
        %1333 = vmatprep.subr.bf16.mxu0 %v1049
        %1334 = vmatpush1.bf16.msra.mxu0 %v1048
        %1335 = vmatprep.subr.bf16.mxu0 %v1053
        %1336 = vmatpush1.bf16.msra.mxu0 %v1052
        %1337 = vmatprep.mubr.bf16.mxu0 %v537
        %1338 = vmatmul.mubr.bf16.gmra.mrb[0].mxu0 %v536
        %v1339 = vpop.f32.mrb[0].mxu0
        %v1340 = vadd.f32 %v1299, %v1339
        %v1341 = vpop.f32.mrb[0].mxu0
        %v1342 = vadd.f32 %v1301, %v1341
        %v1343 = vpop.f32.mrb[0].mxu0
        %v1344 = vpop.f32.mrb[0].mxu0
        %1345 = vdwg.mxu0
        %v1346 = vmax.f32 %v1258, 0.0
        %v1347 = vmax.f32 %v1260, 0.0
        %v1348 = vmax.f32 %v1340, 0.0
        %v1349 = vmax.f32 %v1342, 0.0
        %v1350 = vpack.c.bf16 %v1346, %v1346
        %v1351 = vpack.c.bf16 %v1347, %v1347
        %v1352 = vpack.c.bf16 %v1348, %v1348
        %v1353 = vpack.c.bf16 %v1349, %v1349
        %v1354 = vld [vmem:[#allocation8] sm:$0xff]
        %v1355 = vld [vmem:[#allocation8 + $0x8] sm:$0xff]
        %v1356 = vld [vmem:[#allocation8 + $0x10] sm:$0xff]
        %v1357 = vld [vmem:[#allocation8 + $0x18] sm:$0xff]
        %v1358 = vld [vmem:[#allocation8 + $0x20] sm:$0xff]
        %v1359 = vld [vmem:[#allocation8 + $0x28] sm:$0xff]
        %v1360 = vld [vmem:[#allocation8 + $0x30] sm:$0xff]
        %v1361 = vld [vmem:[#allocation8 + $0x38] sm:$0xff]
        %v1362 = vld [vmem:[#allocation8 + $0x40] sm:$0xff]
        %v1363 = vld [vmem:[#allocation8 + $0x48] sm:$0xff]
        %v1364 = vld [vmem:[#allocation8 + $0x50] sm:$0xff]
        %v1365 = vld [vmem:[#allocation8 + $0x58] sm:$0xff]
        %v1366 = vld [vmem:[#allocation8 + $0x60] sm:$0xff]
        %v1367 = vld [vmem:[#allocation8 + $0x68] sm:$0xff]
        %v1368 = vld [vmem:[#allocation8 + $0x70] sm:$0xff]
        %v1369 = vld [vmem:[#allocation8 + $0x78] sm:$0xff]
        %v1370 = vld [vmem:[#allocation8 + $0x80] sm:$0xff]
        %v1371 = vld [vmem:[#allocation8 + $0x88] sm:$0xff]
        %v1372 = vld [vmem:[#allocation8 + $0x90] sm:$0xff]
        %v1373 = vld [vmem:[#allocation8 + $0x98] sm:$0xff]
        %v1374 = vld [vmem:[#allocation8 + $0xa0] sm:$0xff]
        %v1375 = vld [vmem:[#allocation8 + $0xa8] sm:$0xff]
        %v1376 = vld [vmem:[#allocation8 + $0xb0] sm:$0xff]
        %v1377 = vld [vmem:[#allocation8 + $0xb8] sm:$0xff]
        %v1378 = vld [vmem:[#allocation8 + $0xc0] sm:$0xff]
        %v1379 = vld [vmem:[#allocation8 + $0xc8] sm:$0xff]
        %v1380 = vld [vmem:[#allocation8 + $0xd0] sm:$0xff]
        %v1381 = vld [vmem:[#allocation8 + $0xd8] sm:$0xff]
        %v1382 = vld [vmem:[#allocation8 + $0xe0] sm:$0xff]
        %v1383 = vld [vmem:[#allocation8 + $0xe8] sm:$0xff]
        %v1384 = vld [vmem:[#allocation8 + $0xf0] sm:$0xff]
        %v1385 = vld [vmem:[#allocation8 + $0xf8] sm:$0xff]
        %v1386 = vld [vmem:[#allocation8 + $0x100] sm:$0xff]
        %v1387 = vld [vmem:[#allocation8 + $0x108] sm:$0xff]
        %v1388 = vld [vmem:[#allocation8 + $0x110] sm:$0xff]
        %v1389 = vld [vmem:[#allocation8 + $0x118] sm:$0xff]
        %v1390 = vld [vmem:[#allocation8 + $0x120] sm:$0xff]
        %v1391 = vld [vmem:[#allocation8 + $0x128] sm:$0xff]
        %v1392 = vld [vmem:[#allocation8 + $0x130] sm:$0xff]
        %v1393 = vld [vmem:[#allocation8 + $0x138] sm:$0xff]
        %v1394 = vld [vmem:[#allocation8 + $0x140] sm:$0xff]
        %v1395 = vld [vmem:[#allocation8 + $0x148] sm:$0xff]
        %v1396 = vld [vmem:[#allocation8 + $0x150] sm:$0xff]
        %v1397 = vld [vmem:[#allocation8 + $0x158] sm:$0xff]
        %v1398 = vld [vmem:[#allocation8 + $0x160] sm:$0xff]
        %v1399 = vld [vmem:[#allocation8 + $0x168] sm:$0xff]
        %v1400 = vld [vmem:[#allocation8 + $0x170] sm:$0xff]
        %v1401 = vld [vmem:[#allocation8 + $0x178] sm:$0xff]
        %v1402 = vld [vmem:[#allocation8 + $0x180] sm:$0xff]
        %v1403 = vld [vmem:[#allocation8 + $0x188] sm:$0xff]
        %v1404 = vld [vmem:[#allocation8 + $0x190] sm:$0xff]
        %v1405 = vld [vmem:[#allocation8 + $0x198] sm:$0xff]
        %v1406 = vld [vmem:[#allocation8 + $0x1a0] sm:$0xff]
        %v1407 = vld [vmem:[#allocation8 + $0x1a8] sm:$0xff]
        %v1408 = vld [vmem:[#allocation8 + $0x1b0] sm:$0xff]
        %v1409 = vld [vmem:[#allocation8 + $0x1b8] sm:$0xff]
        %v1410 = vld [vmem:[#allocation8 + $0x1c0] sm:$0xff]
        %v1411 = vld [vmem:[#allocation8 + $0x1c8] sm:$0xff]
        %v1412 = vld [vmem:[#allocation8 + $0x1d0] sm:$0xff]
        %v1413 = vld [vmem:[#allocation8 + $0x1d8] sm:$0xff]
        %v1414 = vld [vmem:[#allocation8 + $0x1e0] sm:$0xff]
        %v1415 = vld [vmem:[#allocation8 + $0x1e8] sm:$0xff]
        %v1416 = vld [vmem:[#allocation8 + $0x1f0] sm:$0xff]
        %v1417 = vld [vmem:[#allocation8 + $0x1f8] sm:$0xff]
        %v1418 = vld [vmem:[#allocation10] sm:$0x3]
        %v1420 = vlaneseq
        %v1421 = vshrl.u32 %v1420, 7
        %v1422 = vsub.s32 0, %v1421
        %v1423 = vrot.slane %v1418, %v1422
        %v1424 = vlaneseq
        %v1425 = vshrl.u32 %v1424, 7
        %v1426 = vsub.s32 1, %v1425
        %v1427 = vrot.slane %v1418, %v1426
        %v1494 = vunpack.c.l.b16 %v1354
        %v1495 = vunpack.c.h.b16 %v1354
        %v1496 = vunpack.c.l.b16 %v1355
        %v1497 = vunpack.c.h.b16 %v1355
        %v1498 = vunpack.c.l.b16 %v1356
        %v1499 = vunpack.c.h.b16 %v1356
        %v1500 = vunpack.c.l.b16 %v1357
        %v1501 = vunpack.c.h.b16 %v1357
        %v1502 = vunpack.c.l.b16 %v1358
        %v1503 = vunpack.c.h.b16 %v1358
        %v1504 = vunpack.c.l.b16 %v1359
        %v1505 = vunpack.c.h.b16 %v1359
        %v1506 = vunpack.c.l.b16 %v1360
        %v1507 = vunpack.c.h.b16 %v1360
        %v1508 = vunpack.c.l.b16 %v1361
        %v1509 = vunpack.c.h.b16 %v1361
        %v1510 = vunpack.c.l.b16 %v1362
        %v1511 = vunpack.c.h.b16 %v1362
        %v1512 = vunpack.c.l.b16 %v1363
        %v1513 = vunpack.c.h.b16 %v1363
        %v1514 = vunpack.c.l.b16 %v1364
        %v1515 = vunpack.c.h.b16 %v1364
        %v1516 = vunpack.c.l.b16 %v1365
        %v1517 = vunpack.c.h.b16 %v1365
        %v1518 = vunpack.c.l.b16 %v1366
        %v1519 = vunpack.c.h.b16 %v1366
        %v1520 = vunpack.c.l.b16 %v1367
        %v1521 = vunpack.c.h.b16 %v1367
        %v1522 = vunpack.c.l.b16 %v1368
        %v1523 = vunpack.c.h.b16 %v1368
        %v1524 = vunpack.c.l.b16 %v1369
        %v1525 = vunpack.c.h.b16 %v1369
        %v1526 = vunpack.c.l.b16 %v1370
        %v1527 = vunpack.c.h.b16 %v1370
        %v1528 = vunpack.c.l.b16 %v1371
        %v1529 = vunpack.c.h.b16 %v1371
        %v1530 = vunpack.c.l.b16 %v1372
        %v1531 = vunpack.c.h.b16 %v1372
        %v1532 = vunpack.c.l.b16 %v1373
        %v1533 = vunpack.c.h.b16 %v1373
        %v1534 = vunpack.c.l.b16 %v1374
        %v1535 = vunpack.c.h.b16 %v1374
        %v1536 = vunpack.c.l.b16 %v1375
        %v1537 = vunpack.c.h.b16 %v1375
        %v1538 = vunpack.c.l.b16 %v1376
        %v1539 = vunpack.c.h.b16 %v1376
        %v1540 = vunpack.c.l.b16 %v1377
        %v1541 = vunpack.c.h.b16 %v1377
        %v1542 = vunpack.c.l.b16 %v1378
        %v1543 = vunpack.c.h.b16 %v1378
        %v1544 = vunpack.c.l.b16 %v1379
        %v1545 = vunpack.c.h.b16 %v1379
        %v1546 = vunpack.c.l.b16 %v1380
        %v1547 = vunpack.c.h.b16 %v1380
        %v1548 = vunpack.c.l.b16 %v1381
        %v1549 = vunpack.c.h.b16 %v1381
        %v1550 = vunpack.c.l.b16 %v1382
        %v1551 = vunpack.c.h.b16 %v1382
        %v1552 = vunpack.c.l.b16 %v1383
        %v1553 = vunpack.c.h.b16 %v1383
        %v1554 = vunpack.c.l.b16 %v1384
        %v1555 = vunpack.c.h.b16 %v1384
        %v1556 = vunpack.c.l.b16 %v1385
        %v1557 = vunpack.c.h.b16 %v1385
        %v1558 = vunpack.c.l.b16 %v1386
        %v1559 = vunpack.c.h.b16 %v1386
        %v1560 = vunpack.c.l.b16 %v1387
        %v1561 = vunpack.c.h.b16 %v1387
        %v1562 = vunpack.c.l.b16 %v1388
        %v1563 = vunpack.c.h.b16 %v1388
        %v1564 = vunpack.c.l.b16 %v1389
        %v1565 = vunpack.c.h.b16 %v1389
        %v1566 = vunpack.c.l.b16 %v1390
        %v1567 = vunpack.c.h.b16 %v1390
        %v1568 = vunpack.c.l.b16 %v1391
        %v1569 = vunpack.c.h.b16 %v1391
        %v1570 = vunpack.c.l.b16 %v1392
        %v1571 = vunpack.c.h.b16 %v1392
        %v1572 = vunpack.c.l.b16 %v1393
        %v1573 = vunpack.c.h.b16 %v1393
        %v1574 = vunpack.c.l.b16 %v1394
        %v1575 = vunpack.c.h.b16 %v1394
        %v1576 = vunpack.c.l.b16 %v1395
        %v1577 = vunpack.c.h.b16 %v1395
        %v1578 = vunpack.c.l.b16 %v1396
        %v1579 = vunpack.c.h.b16 %v1396
        %v1580 = vunpack.c.l.b16 %v1397
        %v1581 = vunpack.c.h.b16 %v1397
        %v1582 = vunpack.c.l.b16 %v1398
        %v1583 = vunpack.c.h.b16 %v1398
        %v1584 = vunpack.c.l.b16 %v1399
        %v1585 = vunpack.c.h.b16 %v1399
        %v1586 = vunpack.c.l.b16 %v1400
        %v1587 = vunpack.c.h.b16 %v1400
        %v1588 = vunpack.c.l.b16 %v1401
        %v1589 = vunpack.c.h.b16 %v1401
        %v1590 = vunpack.c.l.b16 %v1402
        %v1591 = vunpack.c.h.b16 %v1402
        %v1592 = vunpack.c.l.b16 %v1403
        %v1593 = vunpack.c.h.b16 %v1403
        %v1594 = vunpack.c.l.b16 %v1404
        %v1595 = vunpack.c.h.b16 %v1404
        %v1596 = vunpack.c.l.b16 %v1405
        %v1597 = vunpack.c.h.b16 %v1405
        %v1598 = vunpack.c.l.b16 %v1406
        %v1599 = vunpack.c.h.b16 %v1406
        %v1600 = vunpack.c.l.b16 %v1407
        %v1601 = vunpack.c.h.b16 %v1407
        %v1602 = vunpack.c.l.b16 %v1408
        %v1603 = vunpack.c.h.b16 %v1408
        %v1604 = vunpack.c.l.b16 %v1409
        %v1605 = vunpack.c.h.b16 %v1409
        %v1606 = vunpack.c.l.b16 %v1410
        %v1607 = vunpack.c.h.b16 %v1410
        %v1608 = vunpack.c.l.b16 %v1411
        %v1609 = vunpack.c.h.b16 %v1411
        %v1610 = vunpack.c.l.b16 %v1412
        %v1611 = vunpack.c.h.b16 %v1412
        %v1612 = vunpack.c.l.b16 %v1413
        %v1613 = vunpack.c.h.b16 %v1413
        %v1614 = vunpack.c.l.b16 %v1414
        %v1615 = vunpack.c.h.b16 %v1414
        %v1616 = vunpack.c.l.b16 %v1415
        %v1617 = vunpack.c.h.b16 %v1415
        %v1618 = vunpack.c.l.b16 %v1416
        %v1619 = vunpack.c.h.b16 %v1416
        %v1620 = vunpack.c.l.b16 %v1417
        %v1621 = vunpack.c.h.b16 %v1417
        %v1622 = vpack.c.b16 %v1496, %v1494
        %v1623 = vpack.c.b16 %v1497, %v1495
        %v1624 = vpack.c.b16 %v1500, %v1498
        %v1625 = vpack.c.b16 %v1501, %v1499
        %v1626 = vpack.c.b16 %v1504, %v1502
        %v1627 = vpack.c.b16 %v1505, %v1503
        %v1628 = vpack.c.b16 %v1508, %v1506
        %v1629 = vpack.c.b16 %v1509, %v1507
        %v1630 = vpack.c.b16 %v1512, %v1510
        %v1631 = vpack.c.b16 %v1513, %v1511
        %v1632 = vpack.c.b16 %v1516, %v1514
        %v1633 = vpack.c.b16 %v1517, %v1515
        %v1634 = vpack.c.b16 %v1520, %v1518
        %v1635 = vpack.c.b16 %v1521, %v1519
        %v1636 = vpack.c.b16 %v1524, %v1522
        %v1637 = vpack.c.b16 %v1525, %v1523
        %v1638 = vpack.c.b16 %v1528, %v1526
        %v1639 = vpack.c.b16 %v1529, %v1527
        %v1640 = vpack.c.b16 %v1532, %v1530
        %v1641 = vpack.c.b16 %v1533, %v1531
        %v1642 = vpack.c.b16 %v1536, %v1534
        %v1643 = vpack.c.b16 %v1537, %v1535
        %v1644 = vpack.c.b16 %v1540, %v1538
        %v1645 = vpack.c.b16 %v1541, %v1539
        %v1646 = vpack.c.b16 %v1544, %v1542
        %v1647 = vpack.c.b16 %v1545, %v1543
        %v1648 = vpack.c.b16 %v1548, %v1546
        %v1649 = vpack.c.b16 %v1549, %v1547
        %v1650 = vpack.c.b16 %v1552, %v1550
        %v1651 = vpack.c.b16 %v1553, %v1551
        %v1652 = vpack.c.b16 %v1556, %v1554
        %v1653 = vpack.c.b16 %v1557, %v1555
        %v1654 = vpack.c.b16 %v1560, %v1558
        %v1655 = vpack.c.b16 %v1561, %v1559
        %v1656 = vpack.c.b16 %v1564, %v1562
        %v1657 = vpack.c.b16 %v1565, %v1563
        %v1658 = vpack.c.b16 %v1568, %v1566
        %v1659 = vpack.c.b16 %v1569, %v1567
        %v1660 = vpack.c.b16 %v1572, %v1570
        %v1661 = vpack.c.b16 %v1573, %v1571
        %v1662 = vpack.c.b16 %v1576, %v1574
        %v1663 = vpack.c.b16 %v1577, %v1575
        %v1664 = vpack.c.b16 %v1580, %v1578
        %v1665 = vpack.c.b16 %v1581, %v1579
        %v1666 = vpack.c.b16 %v1584, %v1582
        %v1667 = vpack.c.b16 %v1585, %v1583
        %v1668 = vpack.c.b16 %v1588, %v1586
        %v1669 = vpack.c.b16 %v1589, %v1587
        %v1670 = vpack.c.b16 %v1592, %v1590
        %v1671 = vpack.c.b16 %v1593, %v1591
        %v1672 = vpack.c.b16 %v1596, %v1594
        %v1673 = vpack.c.b16 %v1597, %v1595
        %v1674 = vpack.c.b16 %v1600, %v1598
        %v1675 = vpack.c.b16 %v1601, %v1599
        %v1676 = vpack.c.b16 %v1604, %v1602
        %v1677 = vpack.c.b16 %v1605, %v1603
        %v1678 = vpack.c.b16 %v1608, %v1606
        %v1679 = vpack.c.b16 %v1609, %v1607
        %v1680 = vpack.c.b16 %v1612, %v1610
        %v1681 = vpack.c.b16 %v1613, %v1611
        %v1682 = vpack.c.b16 %v1616, %v1614
        %v1683 = vpack.c.b16 %v1617, %v1615
        %v1684 = vpack.c.b16 %v1620, %v1618
        %v1685 = vpack.c.b16 %v1621, %v1619
        %1750 = vmatprep.subr.bf16.mxu0 %v1623
        %1751 = vmatpush1.bf16.msra.mxu0 %v1622
        %1752 = vmatprep.subr.bf16.mxu0 %v1625
        %1753 = vmatpush1.bf16.msra.mxu0 %v1624
        %1754 = vmatprep.subr.bf16.mxu0 %v1627
        %1755 = vmatpush1.bf16.msra.mxu0 %v1626
        %1756 = vmatprep.subr.bf16.mxu0 %v1629
        %1757 = vmatpush1.bf16.msra.mxu0 %v1628
        %1758 = vmatprep.subr.bf16.mxu0 %v1631
        %1759 = vmatpush1.bf16.msra.mxu0 %v1630
        %1760 = vmatprep.subr.bf16.mxu0 %v1633
        %1761 = vmatpush1.bf16.msra.mxu0 %v1632
        %1762 = vmatprep.subr.bf16.mxu0 %v1635
        %1763 = vmatpush1.bf16.msra.mxu0 %v1634
        %1764 = vmatprep.subr.bf16.mxu0 %v1637
        %1765 = vmatpush1.bf16.msra.mxu0 %v1636
        %1766 = vmatprep.subr.bf16.mxu0 %v1639
        %1767 = vmatpush1.bf16.msra.mxu0 %v1638
        %1768 = vmatprep.subr.bf16.mxu0 %v1641
        %1769 = vmatpush1.bf16.msra.mxu0 %v1640
        %1770 = vmatprep.subr.bf16.mxu0 %v1643
        %1771 = vmatpush1.bf16.msra.mxu0 %v1642
        %1772 = vmatprep.subr.bf16.mxu0 %v1645
        %1773 = vmatpush1.bf16.msra.mxu0 %v1644
        %1774 = vmatprep.subr.bf16.mxu0 %v1647
        %1775 = vmatpush1.bf16.msra.mxu0 %v1646
        %1776 = vmatprep.subr.bf16.mxu0 %v1649
        %1777 = vmatpush1.bf16.msra.mxu0 %v1648
        %1778 = vmatprep.subr.bf16.mxu0 %v1651
        %1779 = vmatpush1.bf16.msra.mxu0 %v1650
        %1780 = vmatprep.subr.bf16.mxu0 %v1653
        %1781 = vmatpush1.bf16.msra.mxu0 %v1652
        %1782 = vmatprep.mubr.bf16.mxu0 %v1351
        %1783 = vmatmul.mubr.bf16.gmra.mrb[0].mxu0 %v1350
        %v1784 = vpop.f32.mrb[0].mxu0
        %v1785 = vadd.f32 %v1423, %v1784
        %v1786 = vpop.f32.mrb[0].mxu0
        %v1787 = vadd.f32 %v1427, %v1786
        %v1788 = vpop.f32.mrb[0].mxu0
        %v1789 = vpop.f32.mrb[0].mxu0
        %1790 = vdwg.mxu0
        %1791 = vmatprep.subr.bf16.mxu0 %v1655
        %1792 = vmatpush1.bf16.msra.mxu0 %v1654
        %1793 = vmatprep.subr.bf16.mxu0 %v1657
        %1794 = vmatpush1.bf16.msra.mxu0 %v1656
        %1795 = vmatprep.subr.bf16.mxu0 %v1659
        %1796 = vmatpush1.bf16.msra.mxu0 %v1658
        %1797 = vmatprep.subr.bf16.mxu0 %v1661
        %1798 = vmatpush1.bf16.msra.mxu0 %v1660
        %1799 = vmatprep.subr.bf16.mxu0 %v1663
        %1800 = vmatpush1.bf16.msra.mxu0 %v1662
        %1801 = vmatprep.subr.bf16.mxu0 %v1665
        %1802 = vmatpush1.bf16.msra.mxu0 %v1664
        %1803 = vmatprep.subr.bf16.mxu0 %v1667
        %1804 = vmatpush1.bf16.msra.mxu0 %v1666
        %1805 = vmatprep.subr.bf16.mxu0 %v1669
        %1806 = vmatpush1.bf16.msra.mxu0 %v1668
        %1807 = vmatprep.subr.bf16.mxu0 %v1671
        %1808 = vmatpush1.bf16.msra.mxu0 %v1670
        %1809 = vmatprep.subr.bf16.mxu0 %v1673
        %1810 = vmatpush1.bf16.msra.mxu0 %v1672
        %1811 = vmatprep.subr.bf16.mxu0 %v1675
        %1812 = vmatpush1.bf16.msra.mxu0 %v1674
        %1813 = vmatprep.subr.bf16.mxu0 %v1677
        %1814 = vmatpush1.bf16.msra.mxu0 %v1676
        %1815 = vmatprep.subr.bf16.mxu0 %v1679
        %1816 = vmatpush1.bf16.msra.mxu0 %v1678
        %1817 = vmatprep.subr.bf16.mxu0 %v1681
        %1818 = vmatpush1.bf16.msra.mxu0 %v1680
        %1819 = vmatprep.subr.bf16.mxu0 %v1683
        %1820 = vmatpush1.bf16.msra.mxu0 %v1682
        %1821 = vmatprep.subr.bf16.mxu0 %v1685
        %1822 = vmatpush1.bf16.msra.mxu0 %v1684
        %1823 = vmatprep.mubr.bf16.mxu0 %v1353
        %1824 = vmatmul.mubr.bf16.gmra.mrb[0].mxu0 %v1352
        %v1825 = vpop.f32.mrb[0].mxu0
        %v1826 = vadd.f32 %v1785, %v1825
        %v1827 = vpop.f32.mrb[0].mxu0
        %v1828 = vadd.f32 %v1787, %v1827
        %v1829 = vpop.f32.mrb[0].mxu0
        %v1830 = vpop.f32.mrb[0].mxu0
        %1831 = vdwg.mxu0
        %v1832 = vpack.c.bf16 %v1826, %v1826
        %v1833 = vpack.c.bf16 %v1828, %v1828
        %v1834 = vld [vmem:[#allocation11] sm:$0xff]
        %v1835 = vld [vmem:[#allocation11 + $0x8] sm:$0xff]
        %v1836 = vld [vmem:[#allocation11 + $0x10] sm:$0xff]
        %v1837 = vld [vmem:[#allocation11 + $0x18] sm:$0xff]
        %v1838 = vld [vmem:[#allocation11 + $0x20] sm:$0xff]
        %v1839 = vld [vmem:[#allocation11 + $0x28] sm:$0xff]
        %v1840 = vld [vmem:[#allocation11 + $0x30] sm:$0xff]
        %v1841 = vld [vmem:[#allocation11 + $0x38] sm:$0xff]
        %v1842 = vld [vmem:[#allocation11 + $0x40] sm:$0xff]
        %v1843 = vld [vmem:[#allocation11 + $0x48] sm:$0xff]
        %v1844 = vld [vmem:[#allocation11 + $0x50] sm:$0xff]
        %v1845 = vld [vmem:[#allocation11 + $0x58] sm:$0xff]
        %v1846 = vld [vmem:[#allocation11 + $0x60] sm:$0xff]
        %v1847 = vld [vmem:[#allocation11 + $0x68] sm:$0xff]
        %v1848 = vld [vmem:[#allocation11 + $0x70] sm:$0xff]
        %v1849 = vld [vmem:[#allocation11 + $0x78] sm:$0xff]
        %v1850 = vld [vmem:[#allocation11 + $0x80] sm:$0xff]
        %v1851 = vld [vmem:[#allocation11 + $0x88] sm:$0xff]
        %v1852 = vld [vmem:[#allocation11 + $0x90] sm:$0xff]
        %v1853 = vld [vmem:[#allocation11 + $0x98] sm:$0xff]
        %v1854 = vld [vmem:[#allocation11 + $0xa0] sm:$0xff]
        %v1855 = vld [vmem:[#allocation11 + $0xa8] sm:$0xff]
        %v1856 = vld [vmem:[#allocation11 + $0xb0] sm:$0xff]
        %v1857 = vld [vmem:[#allocation11 + $0xb8] sm:$0xff]
        %v1858 = vld [vmem:[#allocation11 + $0xc0] sm:$0xff]
        %v1859 = vld [vmem:[#allocation11 + $0xc8] sm:$0xff]
        %v1860 = vld [vmem:[#allocation11 + $0xd0] sm:$0xff]
        %v1861 = vld [vmem:[#allocation11 + $0xd8] sm:$0xff]
        %v1862 = vld [vmem:[#allocation11 + $0xe0] sm:$0xff]
        %v1863 = vld [vmem:[#allocation11 + $0xe8] sm:$0xff]
        %v1864 = vld [vmem:[#allocation11 + $0xf0] sm:$0xff]
        %v1865 = vld [vmem:[#allocation11 + $0xf8] sm:$0xff]
        %v1866 = vld [vmem:[#allocation11 + $0x100] sm:$0xff]
        %v1867 = vld [vmem:[#allocation11 + $0x108] sm:$0xff]
        %v1868 = vld [vmem:[#allocation11 + $0x110] sm:$0xff]
        %v1869 = vld [vmem:[#allocation11 + $0x118] sm:$0xff]
        %v1870 = vld [vmem:[#allocation11 + $0x120] sm:$0xff]
        %v1871 = vld [vmem:[#allocation11 + $0x128] sm:$0xff]
        %v1872 = vld [vmem:[#allocation11 + $0x130] sm:$0xff]
        %v1873 = vld [vmem:[#allocation11 + $0x138] sm:$0xff]
        %v1874 = vld [vmem:[#allocation11 + $0x140] sm:$0xff]
        %v1875 = vld [vmem:[#allocation11 + $0x148] sm:$0xff]
        %v1876 = vld [vmem:[#allocation11 + $0x150] sm:$0xff]
        %v1877 = vld [vmem:[#allocation11 + $0x158] sm:$0xff]
        %v1878 = vld [vmem:[#allocation11 + $0x160] sm:$0xff]
        %v1879 = vld [vmem:[#allocation11 + $0x168] sm:$0xff]
        %v1880 = vld [vmem:[#allocation11 + $0x170] sm:$0xff]
        %v1881 = vld [vmem:[#allocation11 + $0x178] sm:$0xff]
        %v1882 = vld [vmem:[#allocation11 + $0x180] sm:$0xff]
        %v1883 = vld [vmem:[#allocation11 + $0x188] sm:$0xff]
        %v1884 = vld [vmem:[#allocation11 + $0x190] sm:$0xff]
        %v1885 = vld [vmem:[#allocation11 + $0x198] sm:$0xff]
        %v1886 = vld [vmem:[#allocation11 + $0x1a0] sm:$0xff]
        %v1887 = vld [vmem:[#allocation11 + $0x1a8] sm:$0xff]
        %v1888 = vld [vmem:[#allocation11 + $0x1b0] sm:$0xff]
        %v1889 = vld [vmem:[#allocation11 + $0x1b8] sm:$0xff]
        %v1890 = vld [vmem:[#allocation11 + $0x1c0] sm:$0xff]
        %v1891 = vld [vmem:[#allocation11 + $0x1c8] sm:$0xff]
        %v1892 = vld [vmem:[#allocation11 + $0x1d0] sm:$0xff]
        %v1893 = vld [vmem:[#allocation11 + $0x1d8] sm:$0xff]
        %v1894 = vld [vmem:[#allocation11 + $0x1e0] sm:$0xff]
        %v1895 = vld [vmem:[#allocation11 + $0x1e8] sm:$0xff]
        %v1896 = vld [vmem:[#allocation11 + $0x1f0] sm:$0xff]
        %v1897 = vld [vmem:[#allocation11 + $0x1f8] sm:$0xff]
        %v1898 = vld [vmem:[#allocation11 + $0x200] sm:$0xff]
        %v1899 = vld [vmem:[#allocation11 + $0x208] sm:$0xff]
        %v1900 = vld [vmem:[#allocation11 + $0x210] sm:$0xff]
        %v1901 = vld [vmem:[#allocation11 + $0x218] sm:$0xff]
        %v1902 = vld [vmem:[#allocation11 + $0x220] sm:$0xff]
        %v1903 = vld [vmem:[#allocation11 + $0x228] sm:$0xff]
        %v1904 = vld [vmem:[#allocation11 + $0x230] sm:$0xff]
        %v1905 = vld [vmem:[#allocation11 + $0x238] sm:$0xff]
        %v1906 = vld [vmem:[#allocation11 + $0x240] sm:$0xff]
        %v1907 = vld [vmem:[#allocation11 + $0x248] sm:$0xff]
        %v1908 = vld [vmem:[#allocation11 + $0x250] sm:$0xff]
        %v1909 = vld [vmem:[#allocation11 + $0x258] sm:$0xff]
        %v1910 = vld [vmem:[#allocation11 + $0x260] sm:$0xff]
        %v1911 = vld [vmem:[#allocation11 + $0x268] sm:$0xff]
        %v1912 = vld [vmem:[#allocation11 + $0x270] sm:$0xff]
        %v1913 = vld [vmem:[#allocation11 + $0x278] sm:$0xff]
        %v1914 = vld [vmem:[#allocation11 + $0x280] sm:$0xff]
        %v1915 = vld [vmem:[#allocation11 + $0x288] sm:$0xff]
        %v1916 = vld [vmem:[#allocation11 + $0x290] sm:$0xff]
        %v1917 = vld [vmem:[#allocation11 + $0x298] sm:$0xff]
        %v1918 = vld [vmem:[#allocation11 + $0x2a0] sm:$0xff]
        %v1919 = vld [vmem:[#allocation11 + $0x2a8] sm:$0xff]
        %v1920 = vld [vmem:[#allocation11 + $0x2b0] sm:$0xff]
        %v1921 = vld [vmem:[#allocation11 + $0x2b8] sm:$0xff]
        %v1922 = vld [vmem:[#allocation11 + $0x2c0] sm:$0xff]
        %v1923 = vld [vmem:[#allocation11 + $0x2c8] sm:$0xff]
        %v1924 = vld [vmem:[#allocation11 + $0x2d0] sm:$0xff]
        %v1925 = vld [vmem:[#allocation11 + $0x2d8] sm:$0xff]
        %v1926 = vld [vmem:[#allocation11 + $0x2e0] sm:$0xff]
        %v1927 = vld [vmem:[#allocation11 + $0x2e8] sm:$0xff]
        %v1928 = vld [vmem:[#allocation11 + $0x2f0] sm:$0xff]
        %v1929 = vld [vmem:[#allocation11 + $0x2f8] sm:$0xff]
        %v1930 = vld [vmem:[#allocation11 + $0x300] sm:$0xff]
        %v1931 = vld [vmem:[#allocation11 + $0x308] sm:$0xff]
        %v1932 = vld [vmem:[#allocation11 + $0x310] sm:$0xff]
        %v1933 = vld [vmem:[#allocation11 + $0x318] sm:$0xff]
        %v1934 = vld [vmem:[#allocation11 + $0x320] sm:$0xff]
        %v1935 = vld [vmem:[#allocation11 + $0x328] sm:$0xff]
        %v1936 = vld [vmem:[#allocation11 + $0x330] sm:$0xff]
        %v1937 = vld [vmem:[#allocation11 + $0x338] sm:$0xff]
        %v1938 = vld [vmem:[#allocation11 + $0x340] sm:$0xff]
        %v1939 = vld [vmem:[#allocation11 + $0x348] sm:$0xff]
        %v1940 = vld [vmem:[#allocation11 + $0x350] sm:$0xff]
        %v1941 = vld [vmem:[#allocation11 + $0x358] sm:$0xff]
        %v1942 = vld [vmem:[#allocation11 + $0x360] sm:$0xff]
        %v1943 = vld [vmem:[#allocation11 + $0x368] sm:$0xff]
        %v1944 = vld [vmem:[#allocation11 + $0x370] sm:$0xff]
        %v1945 = vld [vmem:[#allocation11 + $0x378] sm:$0xff]
        %v1946 = vld [vmem:[#allocation11 + $0x380] sm:$0xff]
        %v1947 = vld [vmem:[#allocation11 + $0x388] sm:$0xff]
        %v1948 = vld [vmem:[#allocation11 + $0x390] sm:$0xff]
        %v1949 = vld [vmem:[#allocation11 + $0x398] sm:$0xff]
        %v1950 = vld [vmem:[#allocation11 + $0x3a0] sm:$0xff]
        %v1951 = vld [vmem:[#allocation11 + $0x3a8] sm:$0xff]
        %v1952 = vld [vmem:[#allocation11 + $0x3b0] sm:$0xff]
        %v1953 = vld [vmem:[#allocation11 + $0x3b8] sm:$0xff]
        %v1954 = vld [vmem:[#allocation11 + $0x3c0] sm:$0xff]
        %v1955 = vld [vmem:[#allocation11 + $0x3c8] sm:$0xff]
        %v1956 = vld [vmem:[#allocation11 + $0x3d0] sm:$0xff]
        %v1957 = vld [vmem:[#allocation11 + $0x3d8] sm:$0xff]
        %v1958 = vld [vmem:[#allocation11 + $0x3e0] sm:$0xff]
        %v1959 = vld [vmem:[#allocation11 + $0x3e8] sm:$0xff]
        %v1960 = vld [vmem:[#allocation11 + $0x3f0] sm:$0xff]
        %v1961 = vld [vmem:[#allocation11 + $0x3f8] sm:$0xff]
        %v1962 = vld [vmem:[#allocation13] sm:$0xff]
        %v1964 = vlaneseq
        %v1965 = vshrl.u32 %v1964, 7
        %v1966 = vsub.s32 0, %v1965
        %v1967 = vrot.slane %v1962, %v1966
        %v1968 = vlaneseq
        %v1969 = vshrl.u32 %v1968, 7
        %v1970 = vsub.s32 1, %v1969
        %v1971 = vrot.slane %v1962, %v1970
        %v1972 = vlaneseq
        %v1973 = vshrl.u32 %v1972, 7
        %v1974 = vsub.s32 2, %v1973
        %v1975 = vrot.slane %v1962, %v1974
        %v1976 = vlaneseq
        %v1977 = vshrl.u32 %v1976, 7
        %v1978 = vsub.s32 3, %v1977
        %v1979 = vrot.slane %v1962, %v1978
        %v1980 = vlaneseq
        %v1981 = vshrl.u32 %v1980, 7
        %v1982 = vsub.s32 4, %v1981
        %v1983 = vrot.slane %v1962, %v1982
        %v1984 = vlaneseq
        %v1985 = vshrl.u32 %v1984, 7
        %v1986 = vsub.s32 5, %v1985
        %v1987 = vrot.slane %v1962, %v1986
        %v1988 = vlaneseq
        %v1989 = vshrl.u32 %v1988, 7
        %v1990 = vsub.s32 6, %v1989
        %v1991 = vrot.slane %v1962, %v1990
        %v1992 = vlaneseq
        %v1993 = vshrl.u32 %v1992, 7
        %v1994 = vsub.s32 7, %v1993
        %v1995 = vrot.slane %v1962, %v1994
        %v2132 = vunpack.c.l.b16 %v1834
        %v2133 = vunpack.c.h.b16 %v1834
        %v2134 = vunpack.c.l.b16 %v1835
        %v2135 = vunpack.c.h.b16 %v1835
        %v2136 = vunpack.c.l.b16 %v1836
        %v2137 = vunpack.c.h.b16 %v1836
        %v2138 = vunpack.c.l.b16 %v1837
        %v2139 = vunpack.c.h.b16 %v1837
        %v2140 = vunpack.c.l.b16 %v1838
        %v2141 = vunpack.c.h.b16 %v1838
        %v2142 = vunpack.c.l.b16 %v1839
        %v2143 = vunpack.c.h.b16 %v1839
        %v2144 = vunpack.c.l.b16 %v1840
        %v2145 = vunpack.c.h.b16 %v1840
        %v2146 = vunpack.c.l.b16 %v1841
        %v2147 = vunpack.c.h.b16 %v1841
        %v2148 = vunpack.c.l.b16 %v1842
        %v2149 = vunpack.c.h.b16 %v1842
        %v2150 = vunpack.c.l.b16 %v1843
        %v2151 = vunpack.c.h.b16 %v1843
        %v2152 = vunpack.c.l.b16 %v1844
        %v2153 = vunpack.c.h.b16 %v1844
        %v2154 = vunpack.c.l.b16 %v1845
        %v2155 = vunpack.c.h.b16 %v1845
        %v2156 = vunpack.c.l.b16 %v1846
        %v2157 = vunpack.c.h.b16 %v1846
        %v2158 = vunpack.c.l.b16 %v1847
        %v2159 = vunpack.c.h.b16 %v1847
        %v2160 = vunpack.c.l.b16 %v1848
        %v2161 = vunpack.c.h.b16 %v1848
        %v2162 = vunpack.c.l.b16 %v1849
        %v2163 = vunpack.c.h.b16 %v1849
        %v2164 = vunpack.c.l.b16 %v1850
        %v2165 = vunpack.c.h.b16 %v1850
        %v2166 = vunpack.c.l.b16 %v1851
        %v2167 = vunpack.c.h.b16 %v1851
        %v2168 = vunpack.c.l.b16 %v1852
        %v2169 = vunpack.c.h.b16 %v1852
        %v2170 = vunpack.c.l.b16 %v1853
        %v2171 = vunpack.c.h.b16 %v1853
        %v2172 = vunpack.c.l.b16 %v1854
        %v2173 = vunpack.c.h.b16 %v1854
        %v2174 = vunpack.c.l.b16 %v1855
        %v2175 = vunpack.c.h.b16 %v1855
        %v2176 = vunpack.c.l.b16 %v1856
        %v2177 = vunpack.c.h.b16 %v1856
        %v2178 = vunpack.c.l.b16 %v1857
        %v2179 = vunpack.c.h.b16 %v1857
        %v2180 = vunpack.c.l.b16 %v1858
        %v2181 = vunpack.c.h.b16 %v1858
        %v2182 = vunpack.c.l.b16 %v1859
        %v2183 = vunpack.c.h.b16 %v1859
        %v2184 = vunpack.c.l.b16 %v1860
        %v2185 = vunpack.c.h.b16 %v1860
        %v2186 = vunpack.c.l.b16 %v1861
        %v2187 = vunpack.c.h.b16 %v1861
        %v2188 = vunpack.c.l.b16 %v1862
        %v2189 = vunpack.c.h.b16 %v1862
        %v2190 = vunpack.c.l.b16 %v1863
        %v2191 = vunpack.c.h.b16 %v1863
        %v2192 = vunpack.c.l.b16 %v1864
        %v2193 = vunpack.c.h.b16 %v1864
        %v2194 = vunpack.c.l.b16 %v1865
        %v2195 = vunpack.c.h.b16 %v1865
        %v2196 = vunpack.c.l.b16 %v1866
        %v2197 = vunpack.c.h.b16 %v1866
        %v2198 = vunpack.c.l.b16 %v1867
        %v2199 = vunpack.c.h.b16 %v1867
        %v2200 = vunpack.c.l.b16 %v1868
        %v2201 = vunpack.c.h.b16 %v1868
        %v2202 = vunpack.c.l.b16 %v1869
        %v2203 = vunpack.c.h.b16 %v1869
        %v2204 = vunpack.c.l.b16 %v1870
        %v2205 = vunpack.c.h.b16 %v1870
        %v2206 = vunpack.c.l.b16 %v1871
        %v2207 = vunpack.c.h.b16 %v1871
        %v2208 = vunpack.c.l.b16 %v1872
        %v2209 = vunpack.c.h.b16 %v1872
        %v2210 = vunpack.c.l.b16 %v1873
        %v2211 = vunpack.c.h.b16 %v1873
        %v2212 = vunpack.c.l.b16 %v1874
        %v2213 = vunpack.c.h.b16 %v1874
        %v2214 = vunpack.c.l.b16 %v1875
        %v2215 = vunpack.c.h.b16 %v1875
        %v2216 = vunpack.c.l.b16 %v1876
        %v2217 = vunpack.c.h.b16 %v1876
        %v2218 = vunpack.c.l.b16 %v1877
        %v2219 = vunpack.c.h.b16 %v1877
        %v2220 = vunpack.c.l.b16 %v1878
        %v2221 = vunpack.c.h.b16 %v1878
        %v2222 = vunpack.c.l.b16 %v1879
        %v2223 = vunpack.c.h.b16 %v1879
        %v2224 = vunpack.c.l.b16 %v1880
        %v2225 = vunpack.c.h.b16 %v1880
        %v2226 = vunpack.c.l.b16 %v1881
        %v2227 = vunpack.c.h.b16 %v1881
        %v2228 = vunpack.c.l.b16 %v1882
        %v2229 = vunpack.c.h.b16 %v1882
        %v2230 = vunpack.c.l.b16 %v1883
        %v2231 = vunpack.c.h.b16 %v1883
        %v2232 = vunpack.c.l.b16 %v1884
        %v2233 = vunpack.c.h.b16 %v1884
        %v2234 = vunpack.c.l.b16 %v1885
        %v2235 = vunpack.c.h.b16 %v1885
        %v2236 = vunpack.c.l.b16 %v1886
        %v2237 = vunpack.c.h.b16 %v1886
        %v2238 = vunpack.c.l.b16 %v1887
        %v2239 = vunpack.c.h.b16 %v1887
        %v2240 = vunpack.c.l.b16 %v1888
        %v2241 = vunpack.c.h.b16 %v1888
        %v2242 = vunpack.c.l.b16 %v1889
        %v2243 = vunpack.c.h.b16 %v1889
        %v2244 = vunpack.c.l.b16 %v1890
        %v2245 = vunpack.c.h.b16 %v1890
        %v2246 = vunpack.c.l.b16 %v1891
        %v2247 = vunpack.c.h.b16 %v1891
        %v2248 = vunpack.c.l.b16 %v1892
        %v2249 = vunpack.c.h.b16 %v1892
        %v2250 = vunpack.c.l.b16 %v1893
        %v2251 = vunpack.c.h.b16 %v1893
        %v2252 = vunpack.c.l.b16 %v1894
        %v2253 = vunpack.c.h.b16 %v1894
        %v2254 = vunpack.c.l.b16 %v1895
        %v2255 = vunpack.c.h.b16 %v1895
        %v2256 = vunpack.c.l.b16 %v1896
        %v2257 = vunpack.c.h.b16 %v1896
        %v2258 = vunpack.c.l.b16 %v1897
        %v2259 = vunpack.c.h.b16 %v1897
        %v2260 = vunpack.c.l.b16 %v1898
        %v2261 = vunpack.c.h.b16 %v1898
        %v2262 = vunpack.c.l.b16 %v1899
        %v2263 = vunpack.c.h.b16 %v1899
        %v2264 = vunpack.c.l.b16 %v1900
        %v2265 = vunpack.c.h.b16 %v1900
        %v2266 = vunpack.c.l.b16 %v1901
        %v2267 = vunpack.c.h.b16 %v1901
        %v2268 = vunpack.c.l.b16 %v1902
        %v2269 = vunpack.c.h.b16 %v1902
        %v2270 = vunpack.c.l.b16 %v1903
        %v2271 = vunpack.c.h.b16 %v1903
        %v2272 = vunpack.c.l.b16 %v1904
        %v2273 = vunpack.c.h.b16 %v1904
        %v2274 = vunpack.c.l.b16 %v1905
        %v2275 = vunpack.c.h.b16 %v1905
        %v2276 = vunpack.c.l.b16 %v1906
        %v2277 = vunpack.c.h.b16 %v1906
        %v2278 = vunpack.c.l.b16 %v1907
        %v2279 = vunpack.c.h.b16 %v1907
        %v2280 = vunpack.c.l.b16 %v1908
        %v2281 = vunpack.c.h.b16 %v1908
        %v2282 = vunpack.c.l.b16 %v1909
        %v2283 = vunpack.c.h.b16 %v1909
        %v2284 = vunpack.c.l.b16 %v1910
        %v2285 = vunpack.c.h.b16 %v1910
        %v2286 = vunpack.c.l.b16 %v1911
        %v2287 = vunpack.c.h.b16 %v1911
        %v2288 = vunpack.c.l.b16 %v1912
        %v2289 = vunpack.c.h.b16 %v1912
        %v2290 = vunpack.c.l.b16 %v1913
        %v2291 = vunpack.c.h.b16 %v1913
        %v2292 = vunpack.c.l.b16 %v1914
        %v2293 = vunpack.c.h.b16 %v1914
        %v2294 = vunpack.c.l.b16 %v1915
        %v2295 = vunpack.c.h.b16 %v1915
        %v2296 = vunpack.c.l.b16 %v1916
        %v2297 = vunpack.c.h.b16 %v1916
        %v2298 = vunpack.c.l.b16 %v1917
        %v2299 = vunpack.c.h.b16 %v1917
        %v2300 = vunpack.c.l.b16 %v1918
        %v2301 = vunpack.c.h.b16 %v1918
        %v2302 = vunpack.c.l.b16 %v1919
        %v2303 = vunpack.c.h.b16 %v1919
        %v2304 = vunpack.c.l.b16 %v1920
        %v2305 = vunpack.c.h.b16 %v1920
        %v2306 = vunpack.c.l.b16 %v1921
        %v2307 = vunpack.c.h.b16 %v1921
        %v2308 = vunpack.c.l.b16 %v1922
        %v2309 = vunpack.c.h.b16 %v1922
        %v2310 = vunpack.c.l.b16 %v1923
        %v2311 = vunpack.c.h.b16 %v1923
        %v2312 = vunpack.c.l.b16 %v1924
        %v2313 = vunpack.c.h.b16 %v1924
        %v2314 = vunpack.c.l.b16 %v1925
        %v2315 = vunpack.c.h.b16 %v1925
        %v2316 = vunpack.c.l.b16 %v1926
        %v2317 = vunpack.c.h.b16 %v1926
        %v2318 = vunpack.c.l.b16 %v1927
        %v2319 = vunpack.c.h.b16 %v1927
        %v2320 = vunpack.c.l.b16 %v1928
        %v2321 = vunpack.c.h.b16 %v1928
        %v2322 = vunpack.c.l.b16 %v1929
        %v2323 = vunpack.c.h.b16 %v1929
        %v2324 = vunpack.c.l.b16 %v1930
        %v2325 = vunpack.c.h.b16 %v1930
        %v2326 = vunpack.c.l.b16 %v1931
        %v2327 = vunpack.c.h.b16 %v1931
        %v2328 = vunpack.c.l.b16 %v1932
        %v2329 = vunpack.c.h.b16 %v1932
        %v2330 = vunpack.c.l.b16 %v1933
        %v2331 = vunpack.c.h.b16 %v1933
        %v2332 = vunpack.c.l.b16 %v1934
        %v2333 = vunpack.c.h.b16 %v1934
        %v2334 = vunpack.c.l.b16 %v1935
        %v2335 = vunpack.c.h.b16 %v1935
        %v2336 = vunpack.c.l.b16 %v1936
        %v2337 = vunpack.c.h.b16 %v1936
        %v2338 = vunpack.c.l.b16 %v1937
        %v2339 = vunpack.c.h.b16 %v1937
        %v2340 = vunpack.c.l.b16 %v1938
        %v2341 = vunpack.c.h.b16 %v1938
        %v2342 = vunpack.c.l.b16 %v1939
        %v2343 = vunpack.c.h.b16 %v1939
        %v2344 = vunpack.c.l.b16 %v1940
        %v2345 = vunpack.c.h.b16 %v1940
        %v2346 = vunpack.c.l.b16 %v1941
        %v2347 = vunpack.c.h.b16 %v1941
        %v2348 = vunpack.c.l.b16 %v1942
        %v2349 = vunpack.c.h.b16 %v1942
        %v2350 = vunpack.c.l.b16 %v1943
        %v2351 = vunpack.c.h.b16 %v1943
        %v2352 = vunpack.c.l.b16 %v1944
        %v2353 = vunpack.c.h.b16 %v1944
        %v2354 = vunpack.c.l.b16 %v1945
        %v2355 = vunpack.c.h.b16 %v1945
        %v2356 = vunpack.c.l.b16 %v1946
        %v2357 = vunpack.c.h.b16 %v1946
        %v2358 = vunpack.c.l.b16 %v1947
        %v2359 = vunpack.c.h.b16 %v1947
        %v2360 = vunpack.c.l.b16 %v1948
        %v2361 = vunpack.c.h.b16 %v1948
        %v2362 = vunpack.c.l.b16 %v1949
        %v2363 = vunpack.c.h.b16 %v1949
        %v2364 = vunpack.c.l.b16 %v1950
        %v2365 = vunpack.c.h.b16 %v1950
        %v2366 = vunpack.c.l.b16 %v1951
        %v2367 = vunpack.c.h.b16 %v1951
        %v2368 = vunpack.c.l.b16 %v1952
        %v2369 = vunpack.c.h.b16 %v1952
        %v2370 = vunpack.c.l.b16 %v1953
        %v2371 = vunpack.c.h.b16 %v1953
        %v2372 = vunpack.c.l.b16 %v1954
        %v2373 = vunpack.c.h.b16 %v1954
        %v2374 = vunpack.c.l.b16 %v1955
        %v2375 = vunpack.c.h.b16 %v1955
        %v2376 = vunpack.c.l.b16 %v1956
        %v2377 = vunpack.c.h.b16 %v1956
        %v2378 = vunpack.c.l.b16 %v1957
        %v2379 = vunpack.c.h.b16 %v1957
        %v2380 = vunpack.c.l.b16 %v1958
        %v2381 = vunpack.c.h.b16 %v1958
        %v2382 = vunpack.c.l.b16 %v1959
        %v2383 = vunpack.c.h.b16 %v1959
        %v2384 = vunpack.c.l.b16 %v1960
        %v2385 = vunpack.c.h.b16 %v1960
        %v2386 = vunpack.c.l.b16 %v1961
        %v2387 = vunpack.c.h.b16 %v1961
        %v2388 = vpack.c.b16 %v2140, %v2132
        %v2389 = vpack.c.b16 %v2141, %v2133
        %v2390 = vpack.c.b16 %v2142, %v2134
        %v2391 = vpack.c.b16 %v2143, %v2135
        %v2392 = vpack.c.b16 %v2144, %v2136
        %v2393 = vpack.c.b16 %v2145, %v2137
        %v2394 = vpack.c.b16 %v2146, %v2138
        %v2395 = vpack.c.b16 %v2147, %v2139
        %v2396 = vpack.c.b16 %v2156, %v2148
        %v2397 = vpack.c.b16 %v2157, %v2149
        %v2398 = vpack.c.b16 %v2158, %v2150
        %v2399 = vpack.c.b16 %v2159, %v2151
        %v2400 = vpack.c.b16 %v2160, %v2152
        %v2401 = vpack.c.b16 %v2161, %v2153
        %v2402 = vpack.c.b16 %v2162, %v2154
        %v2403 = vpack.c.b16 %v2163, %v2155
        %v2404 = vpack.c.b16 %v2172, %v2164
        %v2405 = vpack.c.b16 %v2173, %v2165
        %v2406 = vpack.c.b16 %v2174, %v2166
        %v2407 = vpack.c.b16 %v2175, %v2167
        %v2408 = vpack.c.b16 %v2176, %v2168
        %v2409 = vpack.c.b16 %v2177, %v2169
        %v2410 = vpack.c.b16 %v2178, %v2170
        %v2411 = vpack.c.b16 %v2179, %v2171
        %v2412 = vpack.c.b16 %v2188, %v2180
        %v2413 = vpack.c.b16 %v2189, %v2181
        %v2414 = vpack.c.b16 %v2190, %v2182
        %v2415 = vpack.c.b16 %v2191, %v2183
        %v2416 = vpack.c.b16 %v2192, %v2184
        %v2417 = vpack.c.b16 %v2193, %v2185
        %v2418 = vpack.c.b16 %v2194, %v2186
        %v2419 = vpack.c.b16 %v2195, %v2187
        %v2420 = vpack.c.b16 %v2204, %v2196
        %v2421 = vpack.c.b16 %v2205, %v2197
        %v2422 = vpack.c.b16 %v2206, %v2198
        %v2423 = vpack.c.b16 %v2207, %v2199
        %v2424 = vpack.c.b16 %v2208, %v2200
        %v2425 = vpack.c.b16 %v2209, %v2201
        %v2426 = vpack.c.b16 %v2210, %v2202
        %v2427 = vpack.c.b16 %v2211, %v2203
        %v2428 = vpack.c.b16 %v2220, %v2212
        %v2429 = vpack.c.b16 %v2221, %v2213
        %v2430 = vpack.c.b16 %v2222, %v2214
        %v2431 = vpack.c.b16 %v2223, %v2215
        %v2432 = vpack.c.b16 %v2224, %v2216
        %v2433 = vpack.c.b16 %v2225, %v2217
        %v2434 = vpack.c.b16 %v2226, %v2218
        %v2435 = vpack.c.b16 %v2227, %v2219
        %v2436 = vpack.c.b16 %v2236, %v2228
        %v2437 = vpack.c.b16 %v2237, %v2229
        %v2438 = vpack.c.b16 %v2238, %v2230
        %v2439 = vpack.c.b16 %v2239, %v2231
        %v2440 = vpack.c.b16 %v2240, %v2232
        %v2441 = vpack.c.b16 %v2241, %v2233
        %v2442 = vpack.c.b16 %v2242, %v2234
        %v2443 = vpack.c.b16 %v2243, %v2235
        %v2444 = vpack.c.b16 %v2252, %v2244
        %v2445 = vpack.c.b16 %v2253, %v2245
        %v2446 = vpack.c.b16 %v2254, %v2246
        %v2447 = vpack.c.b16 %v2255, %v2247
        %v2448 = vpack.c.b16 %v2256, %v2248
        %v2449 = vpack.c.b16 %v2257, %v2249
        %v2450 = vpack.c.b16 %v2258, %v2250
        %v2451 = vpack.c.b16 %v2259, %v2251
        %v2452 = vpack.c.b16 %v2268, %v2260
        %v2453 = vpack.c.b16 %v2269, %v2261
        %v2454 = vpack.c.b16 %v2270, %v2262
        %v2455 = vpack.c.b16 %v2271, %v2263
        %v2456 = vpack.c.b16 %v2272, %v2264
        %v2457 = vpack.c.b16 %v2273, %v2265
        %v2458 = vpack.c.b16 %v2274, %v2266
        %v2459 = vpack.c.b16 %v2275, %v2267
        %v2460 = vpack.c.b16 %v2284, %v2276
        %v2461 = vpack.c.b16 %v2285, %v2277
        %v2462 = vpack.c.b16 %v2286, %v2278
        %v2463 = vpack.c.b16 %v2287, %v2279
        %v2464 = vpack.c.b16 %v2288, %v2280
        %v2465 = vpack.c.b16 %v2289, %v2281
        %v2466 = vpack.c.b16 %v2290, %v2282
        %v2467 = vpack.c.b16 %v2291, %v2283
        %v2468 = vpack.c.b16 %v2300, %v2292
        %v2469 = vpack.c.b16 %v2301, %v2293
        %v2470 = vpack.c.b16 %v2302, %v2294
        %v2471 = vpack.c.b16 %v2303, %v2295
        %v2472 = vpack.c.b16 %v2304, %v2296
        %v2473 = vpack.c.b16 %v2305, %v2297
        %v2474 = vpack.c.b16 %v2306, %v2298
        %v2475 = vpack.c.b16 %v2307, %v2299
        %v2476 = vpack.c.b16 %v2316, %v2308
        %v2477 = vpack.c.b16 %v2317, %v2309
        %v2478 = vpack.c.b16 %v2318, %v2310
        %v2479 = vpack.c.b16 %v2319, %v2311
        %v2480 = vpack.c.b16 %v2320, %v2312
        %v2481 = vpack.c.b16 %v2321, %v2313
        %v2482 = vpack.c.b16 %v2322, %v2314
        %v2483 = vpack.c.b16 %v2323, %v2315
        %v2484 = vpack.c.b16 %v2332, %v2324
        %v2485 = vpack.c.b16 %v2333, %v2325
        %v2486 = vpack.c.b16 %v2334, %v2326
        %v2487 = vpack.c.b16 %v2335, %v2327
        %v2488 = vpack.c.b16 %v2336, %v2328
        %v2489 = vpack.c.b16 %v2337, %v2329
        %v2490 = vpack.c.b16 %v2338, %v2330
        %v2491 = vpack.c.b16 %v2339, %v2331
        %v2492 = vpack.c.b16 %v2348, %v2340
        %v2493 = vpack.c.b16 %v2349, %v2341
        %v2494 = vpack.c.b16 %v2350, %v2342
        %v2495 = vpack.c.b16 %v2351, %v2343
        %v2496 = vpack.c.b16 %v2352, %v2344
        %v2497 = vpack.c.b16 %v2353, %v2345
        %v2498 = vpack.c.b16 %v2354, %v2346
        %v2499 = vpack.c.b16 %v2355, %v2347
        %v2500 = vpack.c.b16 %v2364, %v2356
        %v2501 = vpack.c.b16 %v2365, %v2357
        %v2502 = vpack.c.b16 %v2366, %v2358
        %v2503 = vpack.c.b16 %v2367, %v2359
        %v2504 = vpack.c.b16 %v2368, %v2360
        %v2505 = vpack.c.b16 %v2369, %v2361
        %v2506 = vpack.c.b16 %v2370, %v2362
        %v2507 = vpack.c.b16 %v2371, %v2363
        %v2508 = vpack.c.b16 %v2380, %v2372
        %v2509 = vpack.c.b16 %v2381, %v2373
        %v2510 = vpack.c.b16 %v2382, %v2374
        %v2511 = vpack.c.b16 %v2383, %v2375
        %v2512 = vpack.c.b16 %v2384, %v2376
        %v2513 = vpack.c.b16 %v2385, %v2377
        %v2514 = vpack.c.b16 %v2386, %v2378
        %v2515 = vpack.c.b16 %v2387, %v2379
        %2644 = vmatprep.subr.bf16.mxu0 %v2389
        %2645 = vmatpush1.bf16.msra.mxu0 %v2388
        %2646 = vmatprep.subr.bf16.mxu0 %v2397
        %2647 = vmatpush1.bf16.msra.mxu0 %v2396
        %2648 = vmatprep.subr.bf16.mxu0 %v2405
        %2649 = vmatpush1.bf16.msra.mxu0 %v2404
        %2650 = vmatprep.subr.bf16.mxu0 %v2413
        %2651 = vmatpush1.bf16.msra.mxu0 %v2412
        %2652 = vmatprep.subr.bf16.mxu0 %v2421
        %2653 = vmatpush1.bf16.msra.mxu0 %v2420
        %2654 = vmatprep.subr.bf16.mxu0 %v2429
        %2655 = vmatpush1.bf16.msra.mxu0 %v2428
        %2656 = vmatprep.subr.bf16.mxu0 %v2437
        %2657 = vmatpush1.bf16.msra.mxu0 %v2436
        %2658 = vmatprep.subr.bf16.mxu0 %v2445
        %2659 = vmatpush1.bf16.msra.mxu0 %v2444
        %2660 = vmatprep.subr.bf16.mxu0 %v2453
        %2661 = vmatpush1.bf16.msra.mxu0 %v2452
        %2662 = vmatprep.subr.bf16.mxu0 %v2461
        %2663 = vmatpush1.bf16.msra.mxu0 %v2460
        %2664 = vmatprep.subr.bf16.mxu0 %v2469
        %2665 = vmatpush1.bf16.msra.mxu0 %v2468
        %2666 = vmatprep.subr.bf16.mxu0 %v2477
        %2667 = vmatpush1.bf16.msra.mxu0 %v2476
        %2668 = vmatprep.subr.bf16.mxu0 %v2485
        %2669 = vmatpush1.bf16.msra.mxu0 %v2484
        %2670 = vmatprep.subr.bf16.mxu0 %v2493
        %2671 = vmatpush1.bf16.msra.mxu0 %v2492
        %2672 = vmatprep.subr.bf16.mxu0 %v2501
        %2673 = vmatpush1.bf16.msra.mxu0 %v2500
        %2674 = vmatprep.subr.bf16.mxu0 %v2509
        %2675 = vmatpush1.bf16.msra.mxu0 %v2508
        %2676 = vmatprep.mubr.bf16.mxu0 %v1833
        %2677 = vmatmul.mubr.bf16.gmra.mrb[0].mxu0 %v1832
        %v2678 = vpop.f32.mrb[0].mxu0
        %v2679 = vadd.f32 %v1967, %v2678
        %v2680 = vpop.f32.mrb[0].mxu0
        %v2681 = vadd.f32 %v1971, %v2680
        %v2682 = vpop.f32.mrb[0].mxu0
        %v2683 = vpop.f32.mrb[0].mxu0
        %2684 = vdwg.mxu0
        %2685 = vmatprep.subr.bf16.mxu0 %v2391
        %2686 = vmatpush1.bf16.msra.mxu0 %v2390
        %2687 = vmatprep.subr.bf16.mxu0 %v2399
        %2688 = vmatpush1.bf16.msra.mxu0 %v2398
        %2689 = vmatprep.subr.bf16.mxu0 %v2407
        %2690 = vmatpush1.bf16.msra.mxu0 %v2406
        %2691 = vmatprep.subr.bf16.mxu0 %v2415
        %2692 = vmatpush1.bf16.msra.mxu0 %v2414
        %2693 = vmatprep.subr.bf16.mxu0 %v2423
        %2694 = vmatpush1.bf16.msra.mxu0 %v2422
        %2695 = vmatprep.subr.bf16.mxu0 %v2431
        %2696 = vmatpush1.bf16.msra.mxu0 %v2430
        %2697 = vmatprep.subr.bf16.mxu0 %v2439
        %2698 = vmatpush1.bf16.msra.mxu0 %v2438
        %2699 = vmatprep.subr.bf16.mxu0 %v2447
        %2700 = vmatpush1.bf16.msra.mxu0 %v2446
        %2701 = vmatprep.subr.bf16.mxu0 %v2455
        %2702 = vmatpush1.bf16.msra.mxu0 %v2454
        %2703 = vmatprep.subr.bf16.mxu0 %v2463
        %2704 = vmatpush1.bf16.msra.mxu0 %v2462
        %2705 = vmatprep.subr.bf16.mxu0 %v2471
        %2706 = vmatpush1.bf16.msra.mxu0 %v2470
        %2707 = vmatprep.subr.bf16.mxu0 %v2479
        %2708 = vmatpush1.bf16.msra.mxu0 %v2478
        %2709 = vmatprep.subr.bf16.mxu0 %v2487
        %2710 = vmatpush1.bf16.msra.mxu0 %v2486
        %2711 = vmatprep.subr.bf16.mxu0 %v2495
        %2712 = vmatpush1.bf16.msra.mxu0 %v2494
        %2713 = vmatprep.subr.bf16.mxu0 %v2503
        %2714 = vmatpush1.bf16.msra.mxu0 %v2502
        %2715 = vmatprep.subr.bf16.mxu0 %v2511
        %2716 = vmatpush1.bf16.msra.mxu0 %v2510
        %2717 = vmatprep.mubr.bf16.mxu0 %v1833
        %2718 = vmatmul.mubr.bf16.gmra.mrb[0].mxu0 %v1832
        %v2719 = vpop.f32.mrb[0].mxu0
        %v2720 = vadd.f32 %v1975, %v2719
        %v2721 = vpop.f32.mrb[0].mxu0
        %v2722 = vadd.f32 %v1979, %v2721
        %v2723 = vpop.f32.mrb[0].mxu0
        %v2724 = vpop.f32.mrb[0].mxu0
        %2725 = vdwg.mxu0
        %2726 = vmatprep.subr.bf16.mxu0 %v2393
        %2727 = vmatpush1.bf16.msra.mxu0 %v2392
        %2728 = vmatprep.subr.bf16.mxu0 %v2401
        %2729 = vmatpush1.bf16.msra.mxu0 %v2400
        %2730 = vmatprep.subr.bf16.mxu0 %v2409
        %2731 = vmatpush1.bf16.msra.mxu0 %v2408
        %2732 = vmatprep.subr.bf16.mxu0 %v2417
        %2733 = vmatpush1.bf16.msra.mxu0 %v2416
        %2734 = vmatprep.subr.bf16.mxu0 %v2425
        %2735 = vmatpush1.bf16.msra.mxu0 %v2424
        %2736 = vmatprep.subr.bf16.mxu0 %v2433
        %2737 = vmatpush1.bf16.msra.mxu0 %v2432
        %2738 = vmatprep.subr.bf16.mxu0 %v2441
        %2739 = vmatpush1.bf16.msra.mxu0 %v2440
        %2740 = vmatprep.subr.bf16.mxu0 %v2449
        %2741 = vmatpush1.bf16.msra.mxu0 %v2448
        %2742 = vmatprep.subr.bf16.mxu0 %v2457
        %2743 = vmatpush1.bf16.msra.mxu0 %v2456
        %2744 = vmatprep.subr.bf16.mxu0 %v2465
        %2745 = vmatpush1.bf16.msra.mxu0 %v2464
        %2746 = vmatprep.subr.bf16.mxu0 %v2473
        %2747 = vmatpush1.bf16.msra.mxu0 %v2472
        %2748 = vmatprep.subr.bf16.mxu0 %v2481
        %2749 = vmatpush1.bf16.msra.mxu0 %v2480
        %2750 = vmatprep.subr.bf16.mxu0 %v2489
        %2751 = vmatpush1.bf16.msra.mxu0 %v2488
        %2752 = vmatprep.subr.bf16.mxu0 %v2497
        %2753 = vmatpush1.bf16.msra.mxu0 %v2496
        %2754 = vmatprep.subr.bf16.mxu0 %v2505
        %2755 = vmatpush1.bf16.msra.mxu0 %v2504
        %2756 = vmatprep.subr.bf16.mxu0 %v2513
        %2757 = vmatpush1.bf16.msra.mxu0 %v2512
        %2758 = vmatprep.mubr.bf16.mxu0 %v1833
        %2759 = vmatmul.mubr.bf16.gmra.mrb[0].mxu0 %v1832
        %v2760 = vpop.f32.mrb[0].mxu0
        %v2761 = vadd.f32 %v1983, %v2760
        %v2762 = vpop.f32.mrb[0].mxu0
        %v2763 = vadd.f32 %v1987, %v2762
        %v2764 = vpop.f32.mrb[0].mxu0
        %v2765 = vpop.f32.mrb[0].mxu0
        %2766 = vdwg.mxu0
        %2767 = vmatprep.subr.bf16.mxu0 %v2395
        %2768 = vmatpush1.bf16.msra.mxu0 %v2394
        %2769 = vmatprep.subr.bf16.mxu0 %v2403
        %2770 = vmatpush1.bf16.msra.mxu0 %v2402
        %2771 = vmatprep.subr.bf16.mxu0 %v2411
        %2772 = vmatpush1.bf16.msra.mxu0 %v2410
        %2773 = vmatprep.subr.bf16.mxu0 %v2419
        %2774 = vmatpush1.bf16.msra.mxu0 %v2418
        %2775 = vmatprep.subr.bf16.mxu0 %v2427
        %2776 = vmatpush1.bf16.msra.mxu0 %v2426
        %2777 = vmatprep.subr.bf16.mxu0 %v2435
        %2778 = vmatpush1.bf16.msra.mxu0 %v2434
        %2779 = vmatprep.subr.bf16.mxu0 %v2443
        %2780 = vmatpush1.bf16.msra.mxu0 %v2442
        %2781 = vmatprep.subr.bf16.mxu0 %v2451
        %2782 = vmatpush1.bf16.msra.mxu0 %v2450
        %2783 = vmatprep.subr.bf16.mxu0 %v2459
        %2784 = vmatpush1.bf16.msra.mxu0 %v2458
        %2785 = vmatprep.subr.bf16.mxu0 %v2467
        %2786 = vmatpush1.bf16.msra.mxu0 %v2466
        %2787 = vmatprep.subr.bf16.mxu0 %v2475
        %2788 = vmatpush1.bf16.msra.mxu0 %v2474
        %2789 = vmatprep.subr.bf16.mxu0 %v2483
        %2790 = vmatpush1.bf16.msra.mxu0 %v2482
        %2791 = vmatprep.subr.bf16.mxu0 %v2491
        %2792 = vmatpush1.bf16.msra.mxu0 %v2490
        %2793 = vmatprep.subr.bf16.mxu0 %v2499
        %2794 = vmatpush1.bf16.msra.mxu0 %v2498
        %2795 = vmatprep.subr.bf16.mxu0 %v2507
        %2796 = vmatpush1.bf16.msra.mxu0 %v2506
        %2797 = vmatprep.subr.bf16.mxu0 %v2515
        %2798 = vmatpush1.bf16.msra.mxu0 %v2514
        %2799 = vmatprep.mubr.bf16.mxu0 %v1833
        %2800 = vmatmul.mubr.bf16.gmra.mrb[0].mxu0 %v1832
        %v2801 = vpop.f32.mrb[0].mxu0
        %v2802 = vadd.f32 %v1991, %v2801
        %v2803 = vpop.f32.mrb[0].mxu0
        %v2804 = vadd.f32 %v1995, %v2803
        %v2805 = vpop.f32.mrb[0].mxu0
        %v2806 = vpop.f32.mrb[0].mxu0
        %2807 = vdwg.mxu0
        %2808 = vst [vmem:[%s375] sm:$0xff] %v2679
        %2809 = vst [vmem:[%s375 + $0x8] sm:$0xff] %v2681
        %2810 = vst [vmem:[%s375 + $0x10] sm:$0xff] %v2720
        %2811 = vst [vmem:[%s375 + $0x18] sm:$0xff] %v2722
        %2812 = vst [vmem:[%s375 + $0x20] sm:$0xff] %v2761
        %2813 = vst [vmem:[%s375 + $0x28] sm:$0xff] %v2763
        %2814 = vst [vmem:[%s375 + $0x30] sm:$0xff] %v2802
        %2815 = vst [vmem:[%s375 + $0x38] sm:$0xff] %v2804
        %s2816 = sand.u32 %s187, 1
        %s2817 = scalar_lea.sflag [#allocation4], %s2816
        %s2818 = sand.u32 %s187, 1
        %s2819 = smul.addr %s2818, 64
        %s2820 = scalar_lea.vmem [#allocation14], %s2819
        // Predicated region
        $region77: #{tpu_custom_call.1} parent=47 // pred_check
          %p2821 = pneg %p197
        $region78: #{tpu_custom_call.1} parent=47 // pred_check_branch
          %2823 = sbr.rel (%p2821) target = $region80
        $region79: #{tpu_custom_call.1} parent=47 // pred_region
          %s2825 = ssub.s32 1024, 1024
          %2826 = vsyncadd %s2817, %s2825
          %s2827 = smul.addr %s27, 8
          %s2828 = smul.addr %s2827, 128
          %s2829 = scalar_lea.hbm %s7, %s2828
          %s2831 = sshll.u32 %s2820, 4
          %s2832 = int_to_ptr.vmem [resolvable:$true] %s2831
          %2834 = dma.vmem_to_hbm [thread:$0]  %s2832, 1024, %s2829, %s2817
        $region80: #{tpu_custom_call.1} parent=47 // pred_fallthru
          _
      $region48: #{tpu_custom_call.1} parent=5 // pred_fallthru
        _
      %p2835 = scmp.le.s32.totalorder 2, %s22
      // Predicated region
      $region81: #{tpu_custom_call.1} parent=5 // pred_check
        %p2836 = pneg %p2835
      $region82: #{tpu_custom_call.1} parent=5 // pred_check_branch
        %2838 = sbr.rel (%p2836) target = $region84
      $region83: #{tpu_custom_call.1} parent=5 // pred_region
        %s2839 = ssub.s32 %s22, 2
        // Predicated region
        $region85: #{tpu_custom_call.1} parent=83 // pred_check
          %p2840 = pneg %p203
        $region86: #{tpu_custom_call.1} parent=83 // pred_check_branch
          %2842 = sbr.rel (%p2840) target = $region88
        $region87: #{tpu_custom_call.1} parent=83 // pred_region
          %s2843 = sand.u32 %s188, 1
          %s2844 = scalar_lea.sflag [#allocation4], %s2843
          %s2845 = sand.u32 %s188, 1
          %s2846 = smul.addr %s2845, 64
          %s2847 = scalar_lea.vmem [#allocation14], %s2846
          %2848 = dma.done %s2844, 1024
        $region88: #{tpu_custom_call.1} parent=83 // pred_fallthru
          _
      $region84: #{tpu_custom_call.1} parent=5 // pred_fallthru
        _
    $region6: #{tpu_custom_call.1} parent=1 // loop_footer
      %s26 = sadd.s32 1, %s22
    $region7: #{tpu_custom_call.1} parent=1 // loop_footer_branch
      %21 = sbr.rel target = $region3
    $region8: #{tpu_custom_call.1} parent=1 // loop_exit
      _
    %2849 = vsyncpa [#allocation3], 1
    %s2850 = scalar_lea.sflag [#allocation3], 1
    %2851 = vsyncpa %s2850, 1
    %2852 = vsyncpa [#allocation6], 1
    %2853 = vsyncpa [#allocation9], 1
    %2854 = vsyncpa [#allocation12], 1
    %2855 = vsyncpa [#allocation4], 1
    %s2856 = scalar_lea.sflag [#allocation4], 1
    %2857 = vsyncpa %s2856, 1

</llo_original>
